<compile_context>
chip_gen: v5e
topology: v5e:2x2
jax: 0.10.0
libtpu: 0.0.40
codegen_flags: <defaults>
</compile_context>

<pallas_src>
import functools
import math

import jax
import jax.numpy as jnp
from jax import lax
from jax.experimental import pallas as pl
from jax.experimental.pallas import tpu as pltpu

_EPS = 1e-5
_BN_SCALE = 1.0 / math.sqrt(1.0 + _EPS)   # inference BN with default init stats
_STN_IDENTITY_FAST_PATH = True            # fc_loc[2] is zero-weight / identity-bias
_VMEM_BUDGET = 26 * 1024 * 1024           # self-imposed per-layer tile budget
_VMEM_LIMIT = 48 * 1024 * 1024            # scoped limit (headroom; < v7x 64 MiB)


def _ceil_to(x, m):
    return ((x + m - 1) // m) * m


# ----------------------------------------------------------------------------
# Direct-conv Pallas kernel: whole padded input resident, row-tiled output,
# k*k accumulating MXU taps, f32 accumulation, bf16 output.
# ----------------------------------------------------------------------------
def _conv_kernel(*refs, nsrc, k, th, wout, cout, act):
    x_refs = refs[:nsrc]
    w_refs = refs[nsrc:2 * nsrc]
    b_ref = refs[2 * nsrc]
    o_ref = refs[2 * nsrc + 1]

    row0 = pl.program_id(0) * th
    acc = jnp.zeros((th * wout, cout), jnp.float32)
    for s in range(nsrc):
        # (th + k - 1, Wp2, Cin_s) slab of the VMEM-resident padded input.
        slab = x_refs[s][pl.ds(row0, th + k - 1)]
        cin = slab.shape[-1]
        for dy in range(k):
            for dx in range(k):
                lhs = slab[dy:dy + th, dx:dx + wout, :].reshape(th * wout, cin)
                acc = acc + jnp.dot(lhs, w_refs[s][dy * k + dx],
                                    preferred_element_type=jnp.float32)

    y = acc + b_ref[...]                        # f32 epilogue (v5e-friendly)
    if act == "relu":
        y = jnp.maximum(y, 0.0)
    elif act == "leaky_relu":                   # nn.LeakyReLU(0.1)
        y = jnp.where(y >= 0.0, y, 0.1 * y)
    o_ref[...] = y.reshape(th, wout, cout).astype(o_ref.dtype)


def _choose_th(hout, k, wp2, wout, cins, cout):
    """Largest divisor of Hout giving >=2 row tiles and fitting the VMEM budget."""
    fixed = 0
    for cin in cins:
        fixed += 2 * (hout + k - 1) * wp2 * cin * 2   # whole padded input (2 bufs, bf16)
        fixed += 2 * (k * k) * cin * cout * 2         # weight taps (2 bufs, bf16)
    cap = max(1, hout // 2)                           # >=2 tiles -> both v7x TCs busy
    for th in sorted({d for d in range(1, hout + 1) if hout % d == 0}, reverse=True):
        if th > cap:
            continue
        tile = 2 * th * wout * cout * 2               # output tile (2 bufs, bf16)
        tile += 2 * th * wout * cout * 4              # f32 acc + dot-result temps
        for cin in cins:
            tile += (th + k - 1) * wp2 * cin * 2      # row slab value
            tile += th * wout * cin * 2               # per-tap lhs temp
        if fixed + tile <= _VMEM_BUDGET:
            return th
    return 1


def conv_bn_act(xs, ws, b, *, k, pad, use_bn=True, act="none"):
    """sum_s Conv2d(xs[s], ws[s], stride 1, zero-pad `pad`) [+ folded BN] [+ act].

    xs: NHWC activation [B,H,W,Cin] or a list of them (folded channel concat);
    ws: matching [Cout, Cin_s, k, k] weight (list).  Returns bf16 NHWC output.
    """
    if not isinstance(xs, (list, tuple)):
        xs, ws = [xs], [ws]
    B, H, W, _ = xs[0].shape
    cout = ws[0].shape[0]
    hout = H + 2 * pad - k + 1
    wout = W + 2 * pad - k + 1
    wp2 = _ceil_to(wout + k - 1, 16)          # sublane-friendly padded input width

    scale = _BN_SCALE if use_bn else 1.0
    bias = (b.astype(jnp.float32) * scale).reshape(1, cout)

    x_pads, w_mats, cins = [], [], []
    for x, w in zip(xs, ws):
        cin = w.shape[1]
        cinp = _ceil_to(cin, 8)
        # [Cout, Cin, k, k] -> [k*k, Cin_p, Cout], BN-folded, bf16.
        wm = jnp.transpose(w * scale, (2, 3, 1, 0)).reshape(k * k, cin, cout)
        if cinp != cin:
            wm = jnp.pad(wm, ((0, 0), (0, cinp - cin), (0, 0)))
        w_mats.append(wm.astype(jnp.bfloat16))
        # Zero-pad rows/cols (+ channel alignment) and cast to bf16 in one pass.
        xp = jnp.pad(x.astype(jnp.bfloat16),
                     ((0, 0), (pad, pad), (pad, wp2 - W - pad), (0, cinp - cin)))
        x_pads.append(xp)
        cins.append(cinp)

    th = _choose_th(hout, k, wp2, wout, cins, cout)
    grid = (hout // th,)

    kernel = functools.partial(_conv_kernel, nsrc=len(x_pads), k=k, th=th,
                               wout=wout, cout=cout, act=act)
    in_specs = (
        # Whole padded input, constant block index -> DMA'd once, VMEM-resident.
        [pl.BlockSpec((hout + k - 1, wp2, c), lambda i: (0, 0, 0)) for c in cins]
        + [pl.BlockSpec((k * k, c, cout), lambda i: (0, 0, 0)) for c in cins]
        + [pl.BlockSpec((1, cout), lambda i: (0, 0))]
    )
    call = pl.pallas_call(
        kernel,
        out_shape=jax.ShapeDtypeStruct((hout, wout, cout), jnp.bfloat16),
        grid_spec=pltpu.PrefetchScalarGridSpec(
            num_scalar_prefetch=0,
            grid=grid,
            in_specs=in_specs,
            out_specs=pl.BlockSpec((th, wout, cout), lambda i: (i, 0, 0)),
        ),
        compiler_params=pltpu.CompilerParams(
            dimension_semantics=("parallel",),
            vmem_limit_bytes=_VMEM_LIMIT),
    )

    outs = []
    for bi in range(B):                       # B == 1 here; loop keeps it general
        args = [xp[bi] for xp in x_pads] + w_mats + [bias]
        outs.append(call(*args))
    return jnp.stack(outs, axis=0)            # [B, Hout, Wout, Cout] bf16


# ----------------------------------------------------------------------------
# Tiny / overhead-dominated ops in plain XLA (per review), plus layout glue.
# ----------------------------------------------------------------------------
def conv_xla(x, w, b, *, pad, use_bn=True, act="none"):
    """Tiny conv (loc3): plain XLA — a pallas_call costs more than the math."""
    scale = _BN_SCALE if use_bn else 1.0
    out = lax.conv_general_dilated(
        x.astype(jnp.float32),
        jnp.transpose(w, (2, 3, 1, 0)).astype(jnp.float32) * scale,
        window_strides=(1, 1), padding=[(pad, pad), (pad, pad)],
        dimension_numbers=("NHWC", "HWIO", "NHWC"))
    out = out + b.astype(jnp.float32) * scale
    if act == "relu":
        out = jnp.maximum(out, 0.0)
    return out


def conv1x1_xla(x, w, b):
    """model6 tail: 1x1 conv 64->1, no BN — avoid a 99%-padded MXU pass."""
    return jnp.einsum("bhwc,oc->bhwo", x.astype(jnp.float32),
                      w[:, :, 0, 0].astype(jnp.float32)) + b.astype(jnp.float32)


def nchw_to_nhwc(x):
    return jnp.transpose(x, (0, 2, 3, 1))


def nhwc_to_nchw(x):
    return jnp.transpose(x, (0, 3, 1, 2))


def avg_pool2(x):
    n, h, w, c = x.shape
    y = x.astype(jnp.float32).reshape(n, h // 2, 2, w // 2, 2, c).mean(axis=(2, 4))
    return y.astype(x.dtype)


def max_pool2(x):
    n, h, w, c = x.shape
    return x.reshape(n, h // 2, 2, w // 2, 2, c).max(axis=(2, 4))


def upsample2_nearest(x):
    return jnp.repeat(jnp.repeat(x, 2, axis=1), 2, axis=2)


def affine_grid(theta, size):
    # F.affine_grid(theta, size), align_corners=False.
    n, c, h, w = size
    xs = (2.0 * jnp.arange(w, dtype=jnp.float32) + 1.0) / w - 1.0
    ys = (2.0 * jnp.arange(h, dtype=jnp.float32) + 1.0) / h - 1.0
    base = jnp.stack([
        jnp.broadcast_to(xs[None, :], (h, w)),
        jnp.broadcast_to(ys[:, None], (h, w)),
        jnp.ones((h, w), jnp.float32),
    ], axis=-1)
    return jnp.einsum("nkm,ijm->nijk", theta, base)        # [N, H, W, 2]


def grid_sample_bilinear_zeros(x, grid):
    # F.grid_sample(mode='bilinear', padding_mode='zeros', align_corners=False).
    n, h, w, c = x.shape
    gx, gy = grid[..., 0], grid[..., 1]
    ix = ((gx + 1.0) * w - 1.0) * 0.5
    iy = ((gy + 1.0) * h - 1.0) * 0.5
    ix0, iy0 = jnp.floor(ix), jnp.floor(iy)
    ix1, iy1 = ix0 + 1.0, iy0 + 1.0
    wx1, wy1 = ix - ix0, iy - iy0
    wx0, wy0 = 1.0 - wx1, 1.0 - wy1
    bidx = jnp.arange(n)[:, None, None]

    def tap(iyf, ixf):
        valid = (ixf >= 0) & (ixf <= w - 1) & (iyf >= 0) & (iyf <= h - 1)
        ii = jnp.clip(iyf, 0, h - 1).astype(jnp.int32)
        jj = jnp.clip(ixf, 0, w - 1).astype(jnp.int32)
        return x[bidx, ii, jj] * valid[..., None].astype(x.dtype)

    return (tap(iy0, ix0) * (wy0 * wx0)[..., None]
            + tap(iy0, ix1) * (wy0 * wx1)[..., None]
            + tap(iy1, ix0) * (wy1 * wx0)[..., None]
            + tap(iy1, ix1) * (wy1 * wx1)[..., None])


# ----------------------------------------------------------------------------
# Deterministic parameter init (shapes follow the PyTorch __init__)
# ----------------------------------------------------------------------------
def conv_init(key, cin, cout, k):
    kw, kb = jax.random.split(key)
    fan_out = cout * k * k                   # kaiming_normal_, mode='fan_out', relu
    w = jax.random.normal(kw, (cout, cin, k, k), jnp.float32) * jnp.sqrt(2.0 / fan_out)
    bound = 1.0 / jnp.sqrt(cin * k * k)
    b = jax.random.uniform(kb, (cout,), jnp.float32, -bound, bound)
    return w, b


def init_params(key):
    ks = list(jax.random.split(key, 16))
    p = {}
    p["m1c1"] = conv_init(ks[0], 1, 32, 3)
    p["m1c2"] = conv_init(ks[1], 32, 64, 3)
    p["m1c3"] = conv_init(ks[2], 64, 64, 3)
    # model2 is defined in the PyTorch module but never used in forward().
    p["m3c1"] = conv_init(ks[3], 128, 256, 3)
    p["m3c2"] = conv_init(ks[4], 256, 256, 3)
    p["m4c1"] = conv_init(ks[5], 256, 256, 3)
    p["m4c2"] = conv_init(ks[6], 256, 128, 3)
    p["m4c3"] = conv_init(ks[7], 128, 64, 3)
    p["m5c1"] = conv_init(ks[8], 1, 32, 3)
    p["m6c1"] = conv_init(ks[9], 96, 64, 3)
    p["m6c2"] = conv_init(ks[10], 64, 1, 1)
    p["loc1"] = conv_init(ks[11], 256, 128, 7)
    p["loc2"] = conv_init(ks[12], 128, 64, 5)
    p["loc3"] = conv_init(ks[13], 64, 10, 3)
    kf1, kf2 = jax.random.split(ks[14])
    p["fc1"] = (jax.random.normal(kf1, (90, 32), jnp.float32) / jnp.sqrt(90.0),
                jax.random.uniform(kf2, (32,), jnp.float32, -0.1, 0.1))
    # fc_loc[2]: weight zeroed, bias = identity affine transform.
    p["fc2"] = (jnp.zeros((32, 6), jnp.float32),
                jnp.array([1, 0, 0, 0, 1, 0], jnp.float32))
    return p


# ----------------------------------------------------------------------------
# Forward pass (mirrors model_wv.forward)
# ----------------------------------------------------------------------------
def forward(p, x0, x_dem):
    x1 = nchw_to_nhwc(x0[:, 0, 0:1])          # [B, H, W, 1]
    x2 = nchw_to_nhwc(x0[:, 1, 0:1])
    xd = nchw_to_nhwc(x_dem)

    def model1(t):
        t = conv_bn_act(t, *p["m1c1"], k=3, pad=1, act="relu")
        t = conv_bn_act(t, *p["m1c2"], k=3, pad=1, act="relu")
        t = avg_pool2(t)
        t = conv_bn_act(t, *p["m1c3"], k=3, pad=1, act="relu")
        return t

    x1 = model1(x1)
    x2 = model1(x2)

    # model3: torch.cat((x1, x2), dim=1) folded into the conv via a Cin split.
    w31, b31 = p["m3c1"]
    x = conv_bn_act([x1, x2], [w31[:, :64], w31[:, 64:]], b31,
                    k=3, pad=1, act="relu")
    x = avg_pool2(x)
    x = conv_bn_act(x, *p["m3c2"], k=3, pad=1, act="relu")   # [B, H/4, W/4, 256]

    # stn: localization1 -> fc_loc -> affine_grid -> grid_sample
    xs = conv_bn_act(x, *p["loc1"], k=7, pad=0, act="relu")
    xs = max_pool2(xs)
    xs = conv_bn_act(xs, *p["loc2"], k=5, pad=0, act="relu")
    xs = max_pool2(xs)
    xs = conv_xla(xs, *p["loc3"], pad=0, act="relu")          # tiny: plain XLA
    xs = max_pool2(xs)                                        # [B, 3, 3, 10]
    xs = nhwc_to_nchw(xs).reshape(xs.shape[0], -1).astype(jnp.float32)
    h = jnp.maximum(xs @ p["fc1"][0] + p["fc1"][1], 0.0)      # tiny fc: plain XLA
    theta = (h @ p["fc2"][0] + p["fc2"][1]).reshape(-1, 2, 3)
    if _STN_IDENTITY_FAST_PATH:
        # theta == identity exactly and align_corners=False sampling lands on
        # pixel centres, so grid_sample(x, affine_grid(theta)) == x.  Keep the
        # branch live via the exactly-1.0 scale; it fuses into the next pad.
        x = x * theta[:, 0, 0][:, None, None, None].astype(x.dtype)
    else:
        n, hh, ww, c = x.shape
        grid = affine_grid(theta, (n, c, hh, ww))
        x = grid_sample_bilinear_zeros(x.astype(jnp.float32), grid)

    # model4
    x = conv_bn_act(x, *p["m4c1"], k=3, pad=1, act="relu")
    x = upsample2_nearest(x)
    x = conv_bn_act(x, *p["m4c2"], k=3, pad=1, act="relu")
    x = upsample2_nearest(x)
    x = conv_bn_act(x, *p["m4c3"], k=3, pad=1, act="relu")    # [B, H, W, 64]

    # model5
    x_d = conv_bn_act(xd, *p["m5c1"], k=3, pad=1, act="relu") # [B, H, W, 32]

    # model6: torch.cat((x, x_d), dim=1) folded into the conv via a Cin split.
    w61, b61 = p["m6c1"]
    x = conv_bn_act([x, x_d], [w61[:, :64], w61[:, 64:]], b61,
                    k=3, pad=1, act="leaky_relu")
    x = conv1x1_xla(x, *p["m6c2"])                            # 1x1, 64 -> 1

    return nhwc_to_nchw(x)                                    # [B, 1, H, W] f32


# ----------------------------------------------------------------------------
# Small correctness self-test of the direct-conv kernel against lax.conv.
# ----------------------------------------------------------------------------
def _self_test_conv():
    kx, kw, kb = jax.random.split(jax.random.PRNGKey(1), 3)
    x = jax.random.normal(kx, (1, 16, 16, 8), jnp.float32)
    w = jax.random.normal(kw, (24, 8, 3, 3), jnp.float32) * 0.1
    b = jax.random.normal(kb, (24,), jnp.float32) * 0.1
    got = conv_bn_act(x, w, b, k=3, pad=1, use_bn=False, act="relu")
    got = got.astype(jnp.float32)
    ref = lax.conv_general_dilated(
        x, jnp.transpose(w, (2, 3, 1, 0)), (1, 1), [(1, 1), (1, 1)],
        dimension_numbers=("NHWC", "HWIO", "NHWC")) + b
    ref = jnp.maximum(ref, 0.0)
    err = float(jnp.max(jnp.abs(got - ref)))
    assert err < 0.1, f"direct-conv self-test failed: max abs err {err}"


if __name__ == "__main__":
    _self_test_conv()

    key = jax.random.PRNGKey(0)
    kp, k0, kd = jax.random.split(key, 3)
    params = init_params(kp)

    # Smallest spatial size for which localization1 yields a 3x3 map (view(-1, 90)).
    B, H, W = 1, 184, 184
    x0 = jax.random.normal(k0, (B, 2, 1, H, W), jnp.float32)
    x_dem = jax.random.normal(kd, (B, 1, H, W), jnp.float32)

    out = jax.jit(forward)(params, x0, x_dem)
    jax.block_until_ready(out)
    assert out.shape == (B, 1, H, W), out.shape
    assert bool(jnp.all(jnp.isfinite(out)))
    print("KERNEL_OK")
</pallas_src>

<mosaic_0001>
module attributes {stable_mosaic.version = 11 : i64} {
  func.func @_conv_kernel(%arg0: i32, %arg1: memref<18x32x8xbf16, #tpu.memory_space<vmem>>, %arg2: memref<9x8x24xbf16, #tpu.memory_space<vmem>>, %arg3: memref<1x24xf32, #tpu.memory_space<vmem>>, %arg4: memref<8x16x24xbf16, #tpu.memory_space<vmem>>) attributes {dimension_semantics = [#tpu.dimension_semantics<parallel>], iteration_bounds = array<i64: 2>, scalar_prefetch = 0 : i64, scratch_operands = 0 : i64, tpu.core_type = #tpu.core_type<tc>, window_params = [{pipeline_mode = #tpu.pipeline_mode<synchronous>, transform_indices = @transform_0, window_bounds = array<i64: 18, 32, 8>}, {pipeline_mode = #tpu.pipeline_mode<synchronous>, transform_indices = @transform_1, window_bounds = array<i64: 9, 8, 24>}, {pipeline_mode = #tpu.pipeline_mode<synchronous>, transform_indices = @transform_2, window_bounds = array<i64: 1, 24>}, {transform_indices = @transform_3, window_bounds = array<i64: 8, 16, 24>}]} {
    %c8_i32 = arith.constant 8 : i32
    %0 = arith.muli %arg0, %c8_i32 : i32
    %cst = arith.constant 0.000000e+00 : f32
    %1 = vector.broadcast %cst : f32 to vector<128x24xf32>
    %2 = arith.index_cast %0 : i32 to index
    %c0 = arith.constant 0 : index
    %c0_0 = arith.constant 0 : index
    %3 = vector.load %arg1[%2, %c0, %c0_0] : memref<18x32x8xbf16, #tpu.memory_space<vmem>>, vector<10x32x8xbf16>
    %4 = vector.extract_strided_slice %3 {offsets = [0, 0, 0], sizes = [8, 16, 8], strides = [1, 1, 1]} : vector<10x32x8xbf16> to vector<8x16x8xbf16>
    %5 = vector.shape_cast %4 : vector<8x16x8xbf16> to vector<128x8xbf16>
    %c0_1 = arith.constant 0 : index
    %c0_2 = arith.constant 0 : index
    %c0_3 = arith.constant 0 : index
    %6 = vector.load %arg2[%c0_1, %c0_2, %c0_3] : memref<9x8x24xbf16, #tpu.memory_space<vmem>>, vector<1x8x24xbf16>
    %7 = vector.shape_cast %6 : vector<1x8x24xbf16> to vector<8x24xbf16>
    %cst_4 = arith.constant dense<0.000000e+00> : vector<128x24xf32>
    %8 = tpu.matmul %5, %7, %cst_4 {dimension_numbers = #tpu.dot_dimension_numbers<[1], [0], [0], [1], [0, 0, 1, 1], [], []>} : vector<128x8xbf16>, vector<8x24xbf16>, vector<128x24xf32> -> vector<128x24xf32>
    %9 = arith.addf %1, %8 : vector<128x24xf32>
    %10 = vector.extract_strided_slice %3 {offsets = [0, 1, 0], sizes = [8, 16, 8], strides = [1, 1, 1]} : vector<10x32x8xbf16> to vector<8x16x8xbf16>
    %11 = vector.shape_cast %10 : vector<8x16x8xbf16> to vector<128x8xbf16>
    %c1 = arith.constant 1 : index
    %c0_5 = arith.constant 0 : index
    %c0_6 = arith.constant 0 : index
    %12 = vector.load %arg2[%c1, %c0_5, %c0_6] : memref<9x8x24xbf16, #tpu.memory_space<vmem>>, vector<1x8x24xbf16>
    %13 = vector.shape_cast %12 : vector<1x8x24xbf16> to vector<8x24xbf16>
    %cst_7 = arith.constant dense<0.000000e+00> : vector<128x24xf32>
    %14 = tpu.matmul %11, %13, %cst_7 {dimension_numbers = #tpu.dot_dimension_numbers<[1], [0], [0], [1], [0, 0, 1, 1], [], []>} : vector<128x8xbf16>, vector<8x24xbf16>, vector<128x24xf32> -> vector<128x24xf32>
    %15 = arith.addf %9, %14 : vector<128x24xf32>
    %16 = vector.extract_strided_slice %3 {offsets = [0, 2, 0], sizes = [8, 16, 8], strides = [1, 1, 1]} : vector<10x32x8xbf16> to vector<8x16x8xbf16>
    %17 = vector.shape_cast %16 : vector<8x16x8xbf16> to vector<128x8xbf16>
    %c2 = arith.constant 2 : index
    %c0_8 = arith.constant 0 : index
    %c0_9 = arith.constant 0 : index
    %18 = vector.load %arg2[%c2, %c0_8, %c0_9] : memref<9x8x24xbf16, #tpu.memory_space<vmem>>, vector<1x8x24xbf16>
    %19 = vector.shape_cast %18 : vector<1x8x24xbf16> to vector<8x24xbf16>
    %cst_10 = arith.constant dense<0.000000e+00> : vector<128x24xf32>
    %20 = tpu.matmul %17, %19, %cst_10 {dimension_numbers = #tpu.dot_dimension_numbers<[1], [0], [0], [1], [0, 0, 1, 1], [], []>} : vector<128x8xbf16>, vector<8x24xbf16>, vector<128x24xf32> -> vector<128x24xf32>
    %21 = arith.addf %15, %20 : vector<128x24xf32>
    %22 = vector.extract_strided_slice %3 {offsets = [1, 0, 0], sizes = [8, 16, 8], strides = [1, 1, 1]} : vector<10x32x8xbf16> to vector<8x16x8xbf16>
    %23 = vector.shape_cast %22 : vector<8x16x8xbf16> to vector<128x8xbf16>
    %c3 = arith.constant 3 : index
    %c0_11 = arith.constant 0 : index
    %c0_12 = arith.constant 0 : index
    %24 = vector.load %arg2[%c3, %c0_11, %c0_12] : memref<9x8x24xbf16, #tpu.memory_space<vmem>>, vector<1x8x24xbf16>
    %25 = vector.shape_cast %24 : vector<1x8x24xbf16> to vector<8x24xbf16>
    %cst_13 = arith.constant dense<0.000000e+00> : vector<128x24xf32>
    %26 = tpu.matmul %23, %25, %cst_13 {dimension_numbers = #tpu.dot_dimension_numbers<[1], [0], [0], [1], [0, 0, 1, 1], [], []>} : vector<128x8xbf16>, vector<8x24xbf16>, vector<128x24xf32> -> vector<128x24xf32>
    %27 = arith.addf %21, %26 : vector<128x24xf32>
    %28 = vector.extract_strided_slice %3 {offsets = [1, 1, 0], sizes = [8, 16, 8], strides = [1, 1, 1]} : vector<10x32x8xbf16> to vector<8x16x8xbf16>
    %29 = vector.shape_cast %28 : vector<8x16x8xbf16> to vector<128x8xbf16>
    %c4 = arith.constant 4 : index
    %c0_14 = arith.constant 0 : index
    %c0_15 = arith.constant 0 : index
    %30 = vector.load %arg2[%c4, %c0_14, %c0_15] : memref<9x8x24xbf16, #tpu.memory_space<vmem>>, vector<1x8x24xbf16>
    %31 = vector.shape_cast %30 : vector<1x8x24xbf16> to vector<8x24xbf16>
    %cst_16 = arith.constant dense<0.000000e+00> : vector<128x24xf32>
    %32 = tpu.matmul %29, %31, %cst_16 {dimension_numbers = #tpu.dot_dimension_numbers<[1], [0], [0], [1], [0, 0, 1, 1], [], []>} : vector<128x8xbf16>, vector<8x24xbf16>, vector<128x24xf32> -> vector<128x24xf32>
    %33 = arith.addf %27, %32 : vector<128x24xf32>
    %34 = vector.extract_strided_slice %3 {offsets = [1, 2, 0], sizes = [8, 16, 8], strides = [1, 1, 1]} : vector<10x32x8xbf16> to vector<8x16x8xbf16>
    %35 = vector.shape_cast %34 : vector<8x16x8xbf16> to vector<128x8xbf16>
    %c5 = arith.constant 5 : index
    %c0_17 = arith.constant 0 : index
    %c0_18 = arith.constant 0 : index
    %36 = vector.load %arg2[%c5, %c0_17, %c0_18] : memref<9x8x24xbf16, #tpu.memory_space<vmem>>, vector<1x8x24xbf16>
    %37 = vector.shape_cast %36 : vector<1x8x24xbf16> to vector<8x24xbf16>
    %cst_19 = arith.constant dense<0.000000e+00> : vector<128x24xf32>
    %38 = tpu.matmul %35, %37, %cst_19 {dimension_numbers = #tpu.dot_dimension_numbers<[1], [0], [0], [1], [0, 0, 1, 1], [], []>} : vector<128x8xbf16>, vector<8x24xbf16>, vector<128x24xf32> -> vector<128x24xf32>
    %39 = arith.addf %33, %38 : vector<128x24xf32>
    %40 = vector.extract_strided_slice %3 {offsets = [2, 0, 0], sizes = [8, 16, 8], strides = [1, 1, 1]} : vector<10x32x8xbf16> to vector<8x16x8xbf16>
    %41 = vector.shape_cast %40 : vector<8x16x8xbf16> to vector<128x8xbf16>
    %c6 = arith.constant 6 : index
    %c0_20 = arith.constant 0 : index
    %c0_21 = arith.constant 0 : index
    %42 = vector.load %arg2[%c6, %c0_20, %c0_21] : memref<9x8x24xbf16, #tpu.memory_space<vmem>>, vector<1x8x24xbf16>
    %43 = vector.shape_cast %42 : vector<1x8x24xbf16> to vector<8x24xbf16>
    %cst_22 = arith.constant dense<0.000000e+00> : vector<128x24xf32>
    %44 = tpu.matmul %41, %43, %cst_22 {dimension_numbers = #tpu.dot_dimension_numbers<[1], [0], [0], [1], [0, 0, 1, 1], [], []>} : vector<128x8xbf16>, vector<8x24xbf16>, vector<128x24xf32> -> vector<128x24xf32>
    %45 = arith.addf %39, %44 : vector<128x24xf32>
    %46 = vector.extract_strided_slice %3 {offsets = [2, 1, 0], sizes = [8, 16, 8], strides = [1, 1, 1]} : vector<10x32x8xbf16> to vector<8x16x8xbf16>
    %47 = vector.shape_cast %46 : vector<8x16x8xbf16> to vector<128x8xbf16>
    %c7 = arith.constant 7 : index
    %c0_23 = arith.constant 0 : index
    %c0_24 = arith.constant 0 : index
    %48 = vector.load %arg2[%c7, %c0_23, %c0_24] : memref<9x8x24xbf16, #tpu.memory_space<vmem>>, vector<1x8x24xbf16>
    %49 = vector.shape_cast %48 : vector<1x8x24xbf16> to vector<8x24xbf16>
    %cst_25 = arith.constant dense<0.000000e+00> : vector<128x24xf32>
    %50 = tpu.matmul %47, %49, %cst_25 {dimension_numbers = #tpu.dot_dimension_numbers<[1], [0], [0], [1], [0, 0, 1, 1], [], []>} : vector<128x8xbf16>, vector<8x24xbf16>, vector<128x24xf32> -> vector<128x24xf32>
    %51 = arith.addf %45, %50 : vector<128x24xf32>
    %52 = vector.extract_strided_slice %3 {offsets = [2, 2, 0], sizes = [8, 16, 8], strides = [1, 1, 1]} : vector<10x32x8xbf16> to vector<8x16x8xbf16>
    %53 = vector.shape_cast %52 : vector<8x16x8xbf16> to vector<128x8xbf16>
    %c8 = arith.constant 8 : index
    %c0_26 = arith.constant 0 : index
    %c0_27 = arith.constant 0 : index
    %54 = vector.load %arg2[%c8, %c0_26, %c0_27] : memref<9x8x24xbf16, #tpu.memory_space<vmem>>, vector<1x8x24xbf16>
    %55 = vector.shape_cast %54 : vector<1x8x24xbf16> to vector<8x24xbf16>
    %cst_28 = arith.constant dense<0.000000e+00> : vector<128x24xf32>
    %56 = tpu.matmul %53, %55, %cst_28 {dimension_numbers = #tpu.dot_dimension_numbers<[1], [0], [0], [1], [0, 0, 1, 1], [], []>} : vector<128x8xbf16>, vector<8x24xbf16>, vector<128x24xf32> -> vector<128x24xf32>
    %57 = arith.addf %51, %56 : vector<128x24xf32>
    %c0_29 = arith.constant 0 : index
    %c0_30 = arith.constant 0 : index
    %58 = vector.load %arg3[%c0_29, %c0_30] : memref<1x24xf32, #tpu.memory_space<vmem>>, vector<1x24xf32>
    %59 = vector.broadcast %58 : vector<1x24xf32> to vector<128x24xf32>
    %60 = arith.addf %57, %59 : vector<128x24xf32>
    %cst_31 = arith.constant 0.000000e+00 : f32
    %61 = vector.broadcast %cst_31 : f32 to vector<128x24xf32>
    %62 = arith.maximumf %60, %61 : vector<128x24xf32>
    %63 = vector.shape_cast %62 : vector<128x24xf32> to vector<8x16x24xf32>
    %64 = arith.truncf %63 : vector<8x16x24xf32> to vector<8x16x24xbf16>
    %c0_32 = arith.constant 0 : index
    %c0_33 = arith.constant 0 : index
    %c0_34 = arith.constant 0 : index
    %65 = vector.load %arg4[%c0_32, %c0_33, %c0_34] : memref<8x16x24xbf16, #tpu.memory_space<vmem>>, vector<8x16x24xbf16>
    tpu.vector_store %arg4[%c0_32, %c0_33, %c0_34], %64 {strides = array<i32>} : memref<8x16x24xbf16, #tpu.memory_space<vmem>>, vector<8x16x24xbf16>,
    return
  }
  func.func @transform_0(%arg0: i32) -> (i32, i32, i32) {
    %c0_i32 = arith.constant 0 : i32
    %c0_i32_0 = arith.constant 0 : i32
    %c0_i32_1 = arith.constant 0 : i32
    %c0_i32_2 = arith.constant 0 : i32
    return %c0_i32, %c0_i32_0, %c0_i32_1 : i32, i32, i32
  }
  func.func @transform_1(%arg0: i32) -> (i32, i32, i32) {
    %c0_i32 = arith.constant 0 : i32
    %c0_i32_0 = arith.constant 0 : i32
    %c0_i32_1 = arith.constant 0 : i32
    %c0_i32_2 = arith.constant 0 : i32
    return %c0_i32, %c0_i32_0, %c0_i32_1 : i32, i32, i32
  }
  func.func @transform_2(%arg0: i32) -> (i32, i32) {
    %c0_i32 = arith.constant 0 : i32
    %c0_i32_0 = arith.constant 0 : i32
    %c0_i32_1 = arith.constant 0 : i32
    return %c0_i32, %c0_i32_0 : i32, i32
  }
  func.func @transform_3(%arg0: i32) -> (i32, i32, i32) {
    %c0_i32 = arith.constant 0 : i32
    %c0_i32_0 = arith.constant 0 : i32
    %c0_i32_1 = arith.constant 0 : i32
    return %arg0, %c0_i32, %c0_i32_0 : i32, i32, i32
  }
}

</mosaic_0001>

<llo_original>
// kernel: tpu_custom_call.1
$region0: #{tpu_custom_call.1}
  #allocation0 [shape = 'u32[]', space=smem, size = 0x4, offset = 0x4, fixed_abs, tag = 'smem constant byte address 0x4 - core index']
  #allocation1 [shape = 'u32[72,128]{1,0:T(1,128)}', space=vmem, size = 0x9000, scoped, tag = 'internal scratch']
  %s0 = inlined_call_operand.vmem [shape: bf16[18,32,8], index: 0, kind: input, shape index: {}]
  %s1 = inlined_call_operand.vmem [shape: bf16[9,8,24], index: 1, kind: input, shape index: {}]
  %s2 = inlined_call_operand.vmem [shape: f32[1,24], index: 2, kind: input, shape index: {}]
  %s3 = inlined_call_operand.hbm [shape: bf16[16,16,24], index: 3, kind: output, shape index: {}]
  %s4 = sld [smem:[#allocation0]]
  $region45: #{tpu_custom_call.1} parent=0
    _
  %s6 = ssub.s32 1, %s4
  %s7 = scalar_select 0, %s6, %s4
  $region1: #{tpu_custom_call.1} parent=0
    #allocation2 [shape = 'u8[65536]{0}', space=vmem, size = 0x10000, scoped, tag = 'output window, operand 0']
    #allocation3 [shape = 's32[2]{0}', space=sflag, size = 0x8, scoped, tag = 'scoped memory for tpu_custom_call.1']
    %8 = vsyncpa [#allocation3], 0
    %s9 = scalar_lea.sflag [#allocation3], 1
    %10 = vsyncpa %s9, 0
    loop: start=0, step=1, limit=4
    $region2: #{tpu_custom_call.1} parent=1 // loop_pre_header
      _
    $region3: #{tpu_custom_call.1} parent=1 // loop_header
      %s12 = sphi 0, %s16
      %p13 = scmp.ge.s32.totalorder %s12, 4
      %s20 = sphi 0, %s20
      %s22 = sphi 0, %s20
      %s23 = sphi 0, %s22
      %s37 = sphi 0, %s23
      %s41 = sphi 0, %s41
      %s43 = sphi 0, %s41
      %s44 = sphi 0, %s43
      %s58 = sphi 0, %s44
      %s62 = sphi 0, %s62
      %s64 = sphi 0, %s62
      %s65 = sphi 0, %s64
      %s79 = sphi 0, %s65
      %s85 = sphi 0, %s87
      %s88 = sphi 0, %s85
      %s89 = sphi 0, %s88
      %s105 = sphi 0, %s89
    $region4: #{tpu_custom_call.1} parent=1 // loop_header_branch
      %15 = sbr.rel (%p13) target = $region8
    $region5: #{tpu_custom_call.1} parent=1 // loop_body
      %s17 = ssub.s32 %s12, 1
      %s18 = ssub.s32 %s12, 2
      %s19 = sadd.s32 %s12, 1
      %s21 = sadd.s32 %s20, 1
      %p24 = scmp.eq.s32.totalorder %s12, 1
      %p25 = scmp.ne.s32.totalorder %s20, %s22
      %p26 = scmp.eq.s32.totalorder %s12, 0
      %p27 = por %p25, %p26
      %p28 = scmp.ne.s32.totalorder %s20, %s22
      %p29 = scmp.eq.s32.totalorder %s17, 1
      %p30 = por %p28, %p29
      %p31 = scmp.ne.s32.totalorder %s22, %s23
      %p32 = scmp.eq.s32.totalorder %s17, 0
      %p33 = por %p31, %p32
      %p34 = scmp.ne.s32.totalorder %s22, %s23
      %p35 = scmp.eq.s32.totalorder %s18, 1
      %p36 = por %p34, %p35
      %p38 = scmp.ne.s32.totalorder %s23, %s37
      %p39 = scmp.eq.s32.totalorder %s18, 0
      %p40 = por %p38, %p39
      %s42 = sadd.s32 %s41, 1
      %p45 = scmp.eq.s32.totalorder %s12, 1
      %p46 = scmp.ne.s32.totalorder %s41, %s43
      %p47 = scmp.eq.s32.totalorder %s12, 0
      %p48 = por %p46, %p47
      %p49 = scmp.ne.s32.totalorder %s41, %s43
      %p50 = scmp.eq.s32.totalorder %s17, 1
      %p51 = por %p49, %p50
      %p52 = scmp.ne.s32.totalorder %s43, %s44
      %p53 = scmp.eq.s32.totalorder %s17, 0
      %p54 = por %p52, %p53
      %p55 = scmp.ne.s32.totalorder %s43, %s44
      %p56 = scmp.eq.s32.totalorder %s18, 1
      %p57 = por %p55, %p56
      %p59 = scmp.ne.s32.totalorder %s44, %s58
      %p60 = scmp.eq.s32.totalorder %s18, 0
      %p61 = por %p59, %p60
      %s63 = sadd.s32 %s62, 1
      %p66 = scmp.eq.s32.totalorder %s12, 1
      %p67 = scmp.ne.s32.totalorder %s62, %s64
      %p68 = scmp.eq.s32.totalorder %s12, 0
      %p69 = por %p67, %p68
      %p70 = scmp.ne.s32.totalorder %s62, %s64
      %p71 = scmp.eq.s32.totalorder %s17, 1
      %p72 = por %p70, %p71
      %p73 = scmp.ne.s32.totalorder %s64, %s65
      %p74 = scmp.eq.s32.totalorder %s17, 0
      %p75 = por %p73, %p74
      %p76 = scmp.ne.s32.totalorder %s64, %s65
      %p77 = scmp.eq.s32.totalorder %s18, 1
      %p78 = por %p76, %p77
      %p80 = scmp.ne.s32.totalorder %s65, %s79
      %p81 = scmp.eq.s32.totalorder %s18, 0
      %p82 = por %p80, %p81
      %s83 = ssub.s32 %s12, %s19
      %p84 = scmp.eq.s32.totalorder %s83, 0
      %s86 = sadd.s32 %s85, 1
      %s87 = scalar_select %p84, %s85, %s86
      %p90 = pneg %p84
      %p91 = scmp.eq.s32.totalorder %s12, 1
      %p92 = por %p90, %p91
      %p93 = scmp.ne.s32.totalorder %s85, %s88
      %p94 = scmp.eq.s32.totalorder %s12, 0
      %p95 = por %p93, %p94
      %p96 = scmp.ne.s32.totalorder %s85, %s88
      %p97 = scmp.eq.s32.totalorder %s17, 1
      %p98 = por %p96, %p97
      %p99 = scmp.ne.s32.totalorder %s88, %s89
      %p100 = scmp.eq.s32.totalorder %s17, 0
      %p101 = por %p99, %p100
      %p102 = scmp.ne.s32.totalorder %s88, %s89
      %p103 = scmp.eq.s32.totalorder %s18, 1
      %p104 = por %p102, %p103
      %p106 = scmp.ne.s32.totalorder %s89, %s105
      %p107 = scmp.eq.s32.totalorder %s18, 0
      %p108 = por %p106, %p107
      %p109 = scmp.le.s32.totalorder 1, %s12
      %p110 = scmp.lt.s32.totalorder %s12, 3
      %p111 = pnand %p109, %p110
      %p112 = pneg %p111
      // Predicated region
      $region9: #{tpu_custom_call.1} parent=5 // pred_check
        _
      $region10: #{tpu_custom_call.1} parent=5 // pred_check_branch
        %114 = sbr.rel (%p111) target = $region12
      $region11: #{tpu_custom_call.1} parent=5 // pred_region
        %s115 = ssub.s32 %s12, 1
        // Predicated region
        $region13: #{tpu_custom_call.1} parent=11 // pred_check
          %p116 = pneg %p33
        $region14: #{tpu_custom_call.1} parent=11 // pred_check_branch
          %118 = sbr.rel (%p116) target = $region16
        $region15: #{tpu_custom_call.1} parent=11 // pred_region
          _
        $region16: #{tpu_custom_call.1} parent=11 // pred_fallthru
          _
        // Predicated region
        $region17: #{tpu_custom_call.1} parent=11 // pred_check
          %p119 = pneg %p54
        $region18: #{tpu_custom_call.1} parent=11 // pred_check_branch
          %121 = sbr.rel (%p119) target = $region20
        $region19: #{tpu_custom_call.1} parent=11 // pred_region
          _
        $region20: #{tpu_custom_call.1} parent=11 // pred_fallthru
          _
        // Predicated region
        $region21: #{tpu_custom_call.1} parent=11 // pred_check
          %p122 = pneg %p75
        $region22: #{tpu_custom_call.1} parent=11 // pred_check_branch
          %124 = sbr.rel (%p122) target = $region24
        $region23: #{tpu_custom_call.1} parent=11 // pred_region
          _
        $region24: #{tpu_custom_call.1} parent=11 // pred_fallthru
          _
      $region12: #{tpu_custom_call.1} parent=5 // pred_fallthru
        _
      %p125 = scmp.lt.s32.totalorder %s12, 2
      // Predicated region
      $region25: #{tpu_custom_call.1} parent=5 // pred_check
        %p126 = pneg %p125
      $region26: #{tpu_custom_call.1} parent=5 // pred_check_branch
        %128 = sbr.rel (%p126) target = $region28
      $region27: #{tpu_custom_call.1} parent=5 // pred_region
        _
      $region28: #{tpu_custom_call.1} parent=5 // pred_fallthru
        _
      %p129 = scmp.le.s32.totalorder 1, %s12
      %p130 = scmp.lt.s32.totalorder %s12, 3
      %p131 = pnand %p129, %p130
      %p132 = pneg %p131
      // Predicated region
      $region29: #{tpu_custom_call.1} parent=5 // pred_check
        _
      $region30: #{tpu_custom_call.1} parent=5 // pred_check_branch
        %134 = sbr.rel (%p131) target = $region32
      $region31: #{tpu_custom_call.1} parent=5 // pred_region
        %s135 = ssub.s32 %s12, 1
        %p136 = pneg %p33
        %p137 = pneg %p30
        %p138 = pneg %p54
        %p139 = pneg %p51
        %p140 = pneg %p75
        %p141 = pneg %p72
        %p142 = pneg %p101
        %p143 = pneg %p98
        %s144 = sand.u32 %s88, 1
        %s145 = scalar_lea.sflag [#allocation3], %s144
        %s146 = sand.u32 %s88, 1
        %s147 = smul.addr %s146, 64
        %s148 = scalar_lea.vmem [#allocation2], %s147
        %s149 = smul.u32 8, %s17
        %s151 = smul.u32 %s17, 8
        %s152 = smul.u32 %s151, 4
        %s153 = smul.addr %s152, 4
        %s154 = scalar_lea.vmem %s0, %s153
        %v155 = vld [vmem:[%s154] sm:$0xf]
        %v156 = vld [vmem:[%s154 + $0x4] sm:$0xf]
        %v157 = vld [vmem:[%s154 + $0x8] sm:$0xf]
        %v158 = vld [vmem:[%s154 + $0x10] sm:$0xf]
        %v159 = vld [vmem:[%s154 + $0x14] sm:$0xf]
        %v160 = vld [vmem:[%s154 + $0x18] sm:$0xf]
        %v161 = vld [vmem:[%s154 + $0x20] sm:$0xf]
        %v162 = vld [vmem:[%s154 + $0x24] sm:$0xf]
        %v163 = vld [vmem:[%s154 + $0x28] sm:$0xf]
        %v164 = vld [vmem:[%s154 + $0x30] sm:$0xf]
        %v165 = vld [vmem:[%s154 + $0x34] sm:$0xf]
        %v166 = vld [vmem:[%s154 + $0x38] sm:$0xf]
        %v167 = vld [vmem:[%s154 + $0x40] sm:$0xf]
        %v168 = vld [vmem:[%s154 + $0x44] sm:$0xf]
        %v169 = vld [vmem:[%s154 + $0x48] sm:$0xf]
        %v170 = vld [vmem:[%s154 + $0x50] sm:$0xf]
        %v171 = vld [vmem:[%s154 + $0x54] sm:$0xf]
        %v172 = vld [vmem:[%s154 + $0x58] sm:$0xf]
        %v173 = vld [vmem:[%s154 + $0x60] sm:$0xf]
        %v174 = vld [vmem:[%s154 + $0x64] sm:$0xf]
        %v175 = vld [vmem:[%s154 + $0x68] sm:$0xf]
        %v176 = vld [vmem:[%s154 + $0x70] sm:$0xf]
        %v177 = vld [vmem:[%s154 + $0x74] sm:$0xf]
        %v178 = vld [vmem:[%s154 + $0x78] sm:$0xf]
        %v179 = vld [vmem:[%s154 + $0x80] sm:$0xf]
        %v180 = vld [vmem:[%s154 + $0x84] sm:$0xf]
        %v181 = vld [vmem:[%s154 + $0x88] sm:$0xf]
        %v182 = vld [vmem:[%s154 + $0x90] sm:$0xf]
        %v183 = vld [vmem:[%s154 + $0x94] sm:$0xf]
        %v184 = vld [vmem:[%s154 + $0x98] sm:$0xf]
        %v185 = vld [vmem:[%s1] sm:$0xf]
        %vm186 = vsmask.f32 3328
        %vm187 = vsmask.f32 7440
        %vm188 = vmor %vm186, %vm187
        %v190 = vshrl.u32 %v155, 16
        %v192 = vrot.slane %v190, 4
        %v193 = vshll.u32 %v155, 16
        %v195 = vrot.slane %v193, 5
        %v196 = vor.u32 %v192, %v195
        %v197 = vrot.slane %v196, 4
        %v199 = vshll.u32 %v156, 16
        %v201 = vrot.slane %v199, 5
        %v202 = vsel %vm188, %v197, %v201
        %v203 = vshrl.u32 %v156, 16
        %v205 = vrot.slane %v203, 4
        %v206 = vor.u32 %v205, %v201
        %v207 = vrot.slane %v206, 4
        %v209 = vshll.u32 %v157, 16
        %v211 = vrot.slane %v209, 5
        %v212 = vsel %vm188, %v207, %v211
        %v214 = vshrl.u32 %v158, 16
        %v216 = vrot.slane %v214, 4
        %v217 = vshll.u32 %v158, 16
        %v219 = vrot.slane %v217, 5
        %v220 = vor.u32 %v216, %v219
        %v221 = vrot.slane %v220, 4
        %v223 = vshll.u32 %v159, 16
        %v225 = vrot.slane %v223, 5
        %v226 = vsel %vm188, %v221, %v225
        %v227 = vshrl.u32 %v159, 16
        %v229 = vrot.slane %v227, 4
        %v230 = vor.u32 %v229, %v225
        %v231 = vrot.slane %v230, 4
        %v233 = vshll.u32 %v160, 16
        %v235 = vrot.slane %v233, 5
        %v236 = vsel %vm188, %v231, %v235
        %v238 = vshrl.u32 %v161, 16
        %v240 = vrot.slane %v238, 4
        %v241 = vshll.u32 %v161, 16
        %v243 = vrot.slane %v241, 5
        %v244 = vor.u32 %v240, %v243
        %v245 = vrot.slane %v244, 4
        %v247 = vshll.u32 %v162, 16
        %v249 = vrot.slane %v247, 5
        %v250 = vsel %vm188, %v245, %v249
        %v251 = vshrl.u32 %v162, 16
        %v253 = vrot.slane %v251, 4
        %v254 = vor.u32 %v253, %v249
        %v255 = vrot.slane %v254, 4
        %v257 = vshll.u32 %v163, 16
        %v259 = vrot.slane %v257, 5
        %v260 = vsel %vm188, %v255, %v259
        %v262 = vshrl.u32 %v164, 16
        %v264 = vrot.slane %v262, 4
        %v265 = vshll.u32 %v164, 16
        %v267 = vrot.slane %v265, 5
        %v268 = vor.u32 %v264, %v267
        %v269 = vrot.slane %v268, 4
        %v271 = vshll.u32 %v165, 16
        %v273 = vrot.slane %v271, 5
        %v274 = vsel %vm188, %v269, %v273
        %v275 = vshrl.u32 %v165, 16
        %v277 = vrot.slane %v275, 4
        %v278 = vor.u32 %v277, %v273
        %v279 = vrot.slane %v278, 4
        %v281 = vshll.u32 %v166, 16
        %v283 = vrot.slane %v281, 5
        %v284 = vsel %vm188, %v279, %v283
        %v286 = vshrl.u32 %v167, 16
        %v288 = vrot.slane %v286, 4
        %v289 = vshll.u32 %v167, 16
        %v291 = vrot.slane %v289, 5
        %v292 = vor.u32 %v288, %v291
        %v293 = vrot.slane %v292, 4
        %v295 = vshll.u32 %v168, 16
        %v297 = vrot.slane %v295, 5
        %v298 = vsel %vm188, %v293, %v297
        %v299 = vshrl.u32 %v168, 16
        %v301 = vrot.slane %v299, 4
        %v302 = vor.u32 %v301, %v297
        %v303 = vrot.slane %v302, 4
        %v305 = vshll.u32 %v169, 16
        %v307 = vrot.slane %v305, 5
        %v308 = vsel %vm188, %v303, %v307
        %v310 = vshrl.u32 %v170, 16
        %v312 = vrot.slane %v310, 4
        %v313 = vshll.u32 %v170, 16
        %v315 = vrot.slane %v313, 5
        %v316 = vor.u32 %v312, %v315
        %v317 = vrot.slane %v316, 4
        %v319 = vshll.u32 %v171, 16
        %v321 = vrot.slane %v319, 5
        %v322 = vsel %vm188, %v317, %v321
        %v323 = vshrl.u32 %v171, 16
        %v325 = vrot.slane %v323, 4
        %v326 = vor.u32 %v325, %v321
        %v327 = vrot.slane %v326, 4
        %v329 = vshll.u32 %v172, 16
        %v331 = vrot.slane %v329, 5
        %v332 = vsel %vm188, %v327, %v331
        %v334 = vshrl.u32 %v173, 16
        %v336 = vrot.slane %v334, 4
        %v337 = vshll.u32 %v173, 16
        %v339 = vrot.slane %v337, 5
        %v340 = vor.u32 %v336, %v339
        %v341 = vrot.slane %v340, 4
        %v343 = vshll.u32 %v174, 16
        %v345 = vrot.slane %v343, 5
        %v346 = vsel %vm188, %v341, %v345
        %v347 = vshrl.u32 %v174, 16
        %v349 = vrot.slane %v347, 4
        %v350 = vor.u32 %v349, %v345
        %v351 = vrot.slane %v350, 4
        %v353 = vshll.u32 %v175, 16
        %v355 = vrot.slane %v353, 5
        %v356 = vsel %vm188, %v351, %v355
        %v358 = vshrl.u32 %v176, 16
        %v360 = vrot.slane %v358, 4
        %v361 = vshll.u32 %v176, 16
        %v363 = vrot.slane %v361, 5
        %v364 = vor.u32 %v360, %v363
        %v365 = vrot.slane %v364, 4
        %v367 = vshll.u32 %v177, 16
        %v369 = vrot.slane %v367, 5
        %v370 = vsel %vm188, %v365, %v369
        %v371 = vshrl.u32 %v177, 16
        %v373 = vrot.slane %v371, 4
        %v374 = vor.u32 %v373, %v369
        %v375 = vrot.slane %v374, 4
        %v377 = vshll.u32 %v178, 16
        %v379 = vrot.slane %v377, 5
        %v380 = vsel %vm188, %v375, %v379
        %s381 = scalar_lea.vmem %s1, 4
        %v382 = vld [vmem:[%s381] sm:$0xf]
        %v383 = vunpack.c.l.b16 %v202
        %v384 = vunpack.c.l.b16 %v212
        %v385 = vunpack.c.l.b16 %v226
        %v386 = vunpack.c.l.b16 %v236
        %v387 = vunpack.c.l.b16 %v250
        %v388 = vunpack.c.l.b16 %v260
        %v389 = vunpack.c.l.b16 %v274
        %v390 = vunpack.c.l.b16 %v284
        %v391 = vunpack.c.l.b16 %v298
        %v392 = vunpack.c.l.b16 %v308
        %v393 = vunpack.c.l.b16 %v322
        %v394 = vunpack.c.l.b16 %v332
        %v395 = vunpack.c.l.b16 %v346
        %v396 = vunpack.c.l.b16 %v356
        %v397 = vunpack.c.l.b16 %v370
        %v398 = vunpack.c.l.b16 %v380
        %v399 = vpack.c.b16 %v384, %v383
        %v400 = vpack.c.b16 %v386, %v385
        %v401 = vpack.c.b16 %v388, %v387
        %v402 = vpack.c.b16 %v390, %v389
        %v403 = vpack.c.b16 %v392, %v391
        %v404 = vpack.c.b16 %v394, %v393
        %v405 = vpack.c.b16 %v396, %v395
        %v406 = vpack.c.b16 %v398, %v397
        %vm407 = vcmask 64512
        %v409 = vsel %vm407, %v399, 0
        %v412 = vsel %vm407, %v400, 0
        %v415 = vsel %vm407, %v401, 0
        %v418 = vsel %vm407, %v402, 0
        %v421 = vsel %vm407, %v403, 0
        %v424 = vsel %vm407, %v404, 0
        %v427 = vsel %vm407, %v405, 0
        %v430 = vsel %vm407, %v406, 0
        %vm432 = vcmask 1043456
        %v434 = vsel %vm432, %v382, 0
        %436 = vmatpush.bf16.msra.mxu0 0
        %437 = vmatpush.bf16.msra.mxu0 0
        %438 = vmatpush.bf16.msra.mxu0 0
        %439 = vmatpush.bf16.msra.mxu0 0
        %440 = vmatpush.bf16.msra.mxu0 0
        %441 = vmatpush.bf16.msra.mxu0 0
        %442 = vmatpush.bf16.msra.mxu0 0
        %443 = vmatpush.bf16.msra.mxu0 %v434
        %444 = vmatmul.bf16.gmra.mxu0 %v409
        %v445 = vpop.f32.mrf.mxu0
        %v446 = vadd.f32 0.0, %v445
        %v447 = vpop.f32.mrf.mxu0
        %v448 = vadd.f32 0.0, %v447
        %449 = vmatmul.bf16.gmra.mxu0 %v412
        %v450 = vpop.f32.mrf.mxu0
        %v451 = vadd.f32 0.0, %v450
        %v452 = vpop.f32.mrf.mxu0
        %v453 = vadd.f32 0.0, %v452
        %454 = vmatmul.bf16.gmra.mxu0 %v415
        %v455 = vpop.f32.mrf.mxu0
        %v456 = vadd.f32 0.0, %v455
        %v457 = vpop.f32.mrf.mxu0
        %v458 = vadd.f32 0.0, %v457
        %459 = vmatmul.bf16.gmra.mxu0 %v418
        %v460 = vpop.f32.mrf.mxu0
        %v461 = vadd.f32 0.0, %v460
        %v462 = vpop.f32.mrf.mxu0
        %v463 = vadd.f32 0.0, %v462
        %464 = vmatmul.bf16.gmra.mxu0 %v421
        %v465 = vpop.f32.mrf.mxu0
        %v466 = vadd.f32 0.0, %v465
        %v467 = vpop.f32.mrf.mxu0
        %v468 = vadd.f32 0.0, %v467
        %469 = vmatmul.bf16.gmra.mxu0 %v424
        %v470 = vpop.f32.mrf.mxu0
        %v471 = vadd.f32 0.0, %v470
        %v472 = vpop.f32.mrf.mxu0
        %v473 = vadd.f32 0.0, %v472
        %474 = vmatmul.bf16.gmra.mxu0 %v427
        %v475 = vpop.f32.mrf.mxu0
        %v476 = vadd.f32 0.0, %v475
        %v477 = vpop.f32.mrf.mxu0
        %v478 = vadd.f32 0.0, %v477
        %479 = vmatmul.bf16.gmra.mxu0 %v430
        %v480 = vpop.f32.mrf.mxu0
        %v481 = vadd.f32 0.0, %v480
        %v482 = vpop.f32.mrf.mxu0
        %v483 = vadd.f32 0.0, %v482
        %484 = vdwg.mxu0
        %v501 = vunpack.c.l.b16 %v155
        %v502 = vunpack.c.l.b16 %v156
        %v503 = vunpack.c.l.b16 %v158
        %v504 = vunpack.c.l.b16 %v159
        %v505 = vunpack.c.l.b16 %v161
        %v506 = vunpack.c.l.b16 %v162
        %v507 = vunpack.c.l.b16 %v164
        %v508 = vunpack.c.l.b16 %v165
        %v509 = vunpack.c.l.b16 %v167
        %v510 = vunpack.c.l.b16 %v168
        %v511 = vunpack.c.l.b16 %v170
        %v512 = vunpack.c.l.b16 %v171
        %v513 = vunpack.c.l.b16 %v173
        %v514 = vunpack.c.l.b16 %v174
        %v515 = vunpack.c.l.b16 %v176
        %v516 = vunpack.c.l.b16 %v177
        %v517 = vpack.c.b16 %v502, %v501
        %v518 = vpack.c.b16 %v504, %v503
        %v519 = vpack.c.b16 %v506, %v505
        %v520 = vpack.c.b16 %v508, %v507
        %v521 = vpack.c.b16 %v510, %v509
        %v522 = vpack.c.b16 %v512, %v511
        %v523 = vpack.c.b16 %v514, %v513
        %v524 = vpack.c.b16 %v516, %v515
        %v526 = vsel %vm407, %v517, 0
        %v529 = vsel %vm407, %v518, 0
        %v532 = vsel %vm407, %v519, 0
        %v535 = vsel %vm407, %v520, 0
        %v538 = vsel %vm407, %v521, 0
        %v541 = vsel %vm407, %v522, 0
        %v544 = vsel %vm407, %v523, 0
        %v547 = vsel %vm407, %v524, 0
        %v550 = vsel %vm432, %v185, 0
        %552 = vmatpush.bf16.msra.mxu0 0
        %553 = vmatpush.bf16.msra.mxu0 0
        %554 = vmatpush.bf16.msra.mxu0 0
        %555 = vmatpush.bf16.msra.mxu0 0
        %556 = vmatpush.bf16.msra.mxu0 0
        %557 = vmatpush.bf16.msra.mxu0 0
        %558 = vmatpush.bf16.msra.mxu0 0
        %559 = vmatpush.bf16.msra.mxu0 %v550
        %560 = vmatmul.bf16.gmra.mxu0 %v526
        %v561 = vpop.f32.mrf.mxu0
        %v562 = vadd.f32 %v446, %v561
        %v563 = vpop.f32.mrf.mxu0
        %v564 = vadd.f32 %v448, %v563
        %565 = vmatmul.bf16.gmra.mxu0 %v529
        %v566 = vpop.f32.mrf.mxu0
        %v567 = vadd.f32 %v451, %v566
        %v568 = vpop.f32.mrf.mxu0
        %v569 = vadd.f32 %v453, %v568
        %570 = vmatmul.bf16.gmra.mxu0 %v532
        %v571 = vpop.f32.mrf.mxu0
        %v572 = vadd.f32 %v456, %v571
        %v573 = vpop.f32.mrf.mxu0
        %v574 = vadd.f32 %v458, %v573
        %575 = vmatmul.bf16.gmra.mxu0 %v535
        %v576 = vpop.f32.mrf.mxu0
        %v577 = vadd.f32 %v461, %v576
        %v578 = vpop.f32.mrf.mxu0
        %v579 = vadd.f32 %v463, %v578
        %580 = vmatmul.bf16.gmra.mxu0 %v538
        %v581 = vpop.f32.mrf.mxu0
        %v582 = vadd.f32 %v466, %v581
        %v583 = vpop.f32.mrf.mxu0
        %v584 = vadd.f32 %v468, %v583
        %585 = vmatmul.bf16.gmra.mxu0 %v541
        %v586 = vpop.f32.mrf.mxu0
        %v587 = vadd.f32 %v471, %v586
        %v588 = vpop.f32.mrf.mxu0
        %v589 = vadd.f32 %v473, %v588
        %590 = vmatmul.bf16.gmra.mxu0 %v544
        %v591 = vpop.f32.mrf.mxu0
        %v592 = vadd.f32 %v476, %v591
        %v593 = vpop.f32.mrf.mxu0
        %v594 = vadd.f32 %v478, %v593
        %595 = vmatmul.bf16.gmra.mxu0 %v547
        %v596 = vpop.f32.mrf.mxu0
        %v597 = vadd.f32 %v481, %v596
        %v598 = vpop.f32.mrf.mxu0
        %v599 = vadd.f32 %v483, %v598
        %600 = vdwg.mxu0
        %vm609 = vcmask 1042432
        %vm610 = vcmask 1046532
        %vm611 = vmor %vm609, %vm610
        %v612 = vrot.slane %v155, 5
        %v613 = vrot.slane %v612, 4
        %v614 = vrot.slane %v156, 5
        %v615 = vsel %vm611, %v613, %v614
        %v616 = vrot.slane %v614, 4
        %v617 = vrot.slane %v157, 5
        %v618 = vsel %vm611, %v616, %v617
        %v619 = vrot.slane %v158, 5
        %v620 = vrot.slane %v619, 4
        %v621 = vrot.slane %v159, 5
        %v622 = vsel %vm611, %v620, %v621
        %v623 = vrot.slane %v621, 4
        %v624 = vrot.slane %v160, 5
        %v625 = vsel %vm611, %v623, %v624
        %v626 = vrot.slane %v161, 5
        %v627 = vrot.slane %v626, 4
        %v628 = vrot.slane %v162, 5
        %v629 = vsel %vm611, %v627, %v628
        %v630 = vrot.slane %v628, 4
        %v631 = vrot.slane %v163, 5
        %v632 = vsel %vm611, %v630, %v631
        %v633 = vrot.slane %v164, 5
        %v634 = vrot.slane %v633, 4
        %v635 = vrot.slane %v165, 5
        %v636 = vsel %vm611, %v634, %v635
        %v637 = vrot.slane %v635, 4
        %v638 = vrot.slane %v166, 5
        %v639 = vsel %vm611, %v637, %v638
        %v640 = vrot.slane %v167, 5
        %v641 = vrot.slane %v640, 4
        %v642 = vrot.slane %v168, 5
        %v643 = vsel %vm611, %v641, %v642
        %v644 = vrot.slane %v642, 4
        %v645 = vrot.slane %v169, 5
        %v646 = vsel %vm611, %v644, %v645
        %v647 = vrot.slane %v170, 5
        %v648 = vrot.slane %v647, 4
        %v649 = vrot.slane %v171, 5
        %v650 = vsel %vm611, %v648, %v649
        %v651 = vrot.slane %v649, 4
        %v652 = vrot.slane %v172, 5
        %v653 = vsel %vm611, %v651, %v652
        %v654 = vrot.slane %v173, 5
        %v655 = vrot.slane %v654, 4
        %v656 = vrot.slane %v174, 5
        %v657 = vsel %vm611, %v655, %v656
        %v658 = vrot.slane %v656, 4
        %v659 = vrot.slane %v175, 5
        %v660 = vsel %vm611, %v658, %v659
        %v661 = vrot.slane %v176, 5
        %v662 = vrot.slane %v661, 4
        %v663 = vrot.slane %v177, 5
        %v664 = vsel %vm611, %v662, %v663
        %v665 = vrot.slane %v663, 4
        %v666 = vrot.slane %v178, 5
        %v667 = vsel %vm611, %v665, %v666
        %s668 = scalar_lea.vmem %s1, 8
        %v669 = vld [vmem:[%s668] sm:$0xf]
        %v670 = vunpack.c.l.b16 %v615
        %v671 = vunpack.c.l.b16 %v618
        %v672 = vunpack.c.l.b16 %v622
        %v673 = vunpack.c.l.b16 %v625
        %v674 = vunpack.c.l.b16 %v629
        %v675 = vunpack.c.l.b16 %v632
        %v676 = vunpack.c.l.b16 %v636
        %v677 = vunpack.c.l.b16 %v639
        %v678 = vunpack.c.l.b16 %v643
        %v679 = vunpack.c.l.b16 %v646
        %v680 = vunpack.c.l.b16 %v650
        %v681 = vunpack.c.l.b16 %v653
        %v682 = vunpack.c.l.b16 %v657
        %v683 = vunpack.c.l.b16 %v660
        %v684 = vunpack.c.l.b16 %v664
        %v685 = vunpack.c.l.b16 %v667
        %v686 = vpack.c.b16 %v671, %v670
        %v687 = vpack.c.b16 %v673, %v672
        %v688 = vpack.c.b16 %v675, %v674
        %v689 = vpack.c.b16 %v677, %v676
        %v690 = vpack.c.b16 %v679, %v678
        %v691 = vpack.c.b16 %v681, %v680
        %v692 = vpack.c.b16 %v683, %v682
        %v693 = vpack.c.b16 %v685, %v684
        %v695 = vsel %vm407, %v686, 0
        %v698 = vsel %vm407, %v687, 0
        %v701 = vsel %vm407, %v688, 0
        %v704 = vsel %vm407, %v689, 0
        %v707 = vsel %vm407, %v690, 0
        %v710 = vsel %vm407, %v691, 0
        %v713 = vsel %vm407, %v692, 0
        %v716 = vsel %vm407, %v693, 0
        %v719 = vsel %vm432, %v669, 0
        %721 = vmatpush.bf16.msra.mxu0 0
        %722 = vmatpush.bf16.msra.mxu0 0
        %723 = vmatpush.bf16.msra.mxu0 0
        %724 = vmatpush.bf16.msra.mxu0 0
        %725 = vmatpush.bf16.msra.mxu0 0
        %726 = vmatpush.bf16.msra.mxu0 0
        %727 = vmatpush.bf16.msra.mxu0 0
        %728 = vmatpush.bf16.msra.mxu0 %v719
        %729 = vmatmul.bf16.gmra.mxu0 %v695
        %v730 = vpop.f32.mrf.mxu0
        %v731 = vadd.f32 0.0, %v730
        %v732 = vpop.f32.mrf.mxu0
        %v733 = vadd.f32 0.0, %v732
        %734 = vmatmul.bf16.gmra.mxu0 %v698
        %v735 = vpop.f32.mrf.mxu0
        %v736 = vadd.f32 0.0, %v735
        %v737 = vpop.f32.mrf.mxu0
        %v738 = vadd.f32 0.0, %v737
        %739 = vmatmul.bf16.gmra.mxu0 %v701
        %v740 = vpop.f32.mrf.mxu0
        %v741 = vadd.f32 0.0, %v740
        %v742 = vpop.f32.mrf.mxu0
        %v743 = vadd.f32 0.0, %v742
        %744 = vmatmul.bf16.gmra.mxu0 %v704
        %v745 = vpop.f32.mrf.mxu0
        %v746 = vadd.f32 0.0, %v745
        %v747 = vpop.f32.mrf.mxu0
        %v748 = vadd.f32 0.0, %v747
        %749 = vmatmul.bf16.gmra.mxu0 %v707
        %v750 = vpop.f32.mrf.mxu0
        %v751 = vadd.f32 0.0, %v750
        %v752 = vpop.f32.mrf.mxu0
        %v753 = vadd.f32 0.0, %v752
        %754 = vmatmul.bf16.gmra.mxu0 %v710
        %v755 = vpop.f32.mrf.mxu0
        %v756 = vadd.f32 0.0, %v755
        %v757 = vpop.f32.mrf.mxu0
        %v758 = vadd.f32 0.0, %v757
        %759 = vmatmul.bf16.gmra.mxu0 %v713
        %v760 = vpop.f32.mrf.mxu0
        %v761 = vadd.f32 0.0, %v760
        %v762 = vpop.f32.mrf.mxu0
        %v763 = vadd.f32 0.0, %v762
        %764 = vmatmul.bf16.gmra.mxu0 %v716
        %v765 = vpop.f32.mrf.mxu0
        %v766 = vadd.f32 0.0, %v765
        %v767 = vpop.f32.mrf.mxu0
        %v768 = vadd.f32 0.0, %v767
        %769 = vdwg.mxu0
        %v770 = vadd.f32 %v562, %v731
        %v771 = vadd.f32 %v564, %v733
        %v772 = vadd.f32 %v567, %v736
        %v773 = vadd.f32 %v569, %v738
        %v774 = vadd.f32 %v572, %v741
        %v775 = vadd.f32 %v574, %v743
        %v776 = vadd.f32 %v577, %v746
        %v777 = vadd.f32 %v579, %v748
        %v778 = vadd.f32 %v582, %v751
        %v779 = vadd.f32 %v584, %v753
        %v780 = vadd.f32 %v587, %v756
        %v781 = vadd.f32 %v589, %v758
        %v782 = vadd.f32 %v592, %v761
        %v783 = vadd.f32 %v594, %v763
        %v784 = vadd.f32 %v597, %v766
        %v785 = vadd.f32 %v599, %v768
        %s786 = scalar_lea.vmem %s1, 12
        %v787 = vld [vmem:[%s786] sm:$0xf]
        %v790 = vunpack.c.l.b16 %v179
        %v791 = vunpack.c.l.b16 %v180
        %v792 = vpack.c.b16 %v791, %v790
        %v794 = vsel %vm407, %v792, 0
        %v797 = vsel %vm432, %v787, 0
        %799 = vmatpush.bf16.msra.mxu0 0
        %800 = vmatpush.bf16.msra.mxu0 0
        %801 = vmatpush.bf16.msra.mxu0 0
        %802 = vmatpush.bf16.msra.mxu0 0
        %803 = vmatpush.bf16.msra.mxu0 0
        %804 = vmatpush.bf16.msra.mxu0 0
        %805 = vmatpush.bf16.msra.mxu0 0
        %806 = vmatpush.bf16.msra.mxu0 %v797
        %807 = vmatmul.bf16.gmra.mxu0 %v529
        %v808 = vpop.f32.mrf.mxu0
        %v809 = vadd.f32 0.0, %v808
        %v810 = vpop.f32.mrf.mxu0
        %v811 = vadd.f32 0.0, %v810
        %812 = vmatmul.bf16.gmra.mxu0 %v532
        %v813 = vpop.f32.mrf.mxu0
        %v814 = vadd.f32 0.0, %v813
        %v815 = vpop.f32.mrf.mxu0
        %v816 = vadd.f32 0.0, %v815
        %817 = vmatmul.bf16.gmra.mxu0 %v535
        %v818 = vpop.f32.mrf.mxu0
        %v819 = vadd.f32 0.0, %v818
        %v820 = vpop.f32.mrf.mxu0
        %v821 = vadd.f32 0.0, %v820
        %822 = vmatmul.bf16.gmra.mxu0 %v538
        %v823 = vpop.f32.mrf.mxu0
        %v824 = vadd.f32 0.0, %v823
        %v825 = vpop.f32.mrf.mxu0
        %v826 = vadd.f32 0.0, %v825
        %827 = vmatmul.bf16.gmra.mxu0 %v541
        %v828 = vpop.f32.mrf.mxu0
        %v829 = vadd.f32 0.0, %v828
        %v830 = vpop.f32.mrf.mxu0
        %v831 = vadd.f32 0.0, %v830
        %832 = vmatmul.bf16.gmra.mxu0 %v544
        %v833 = vpop.f32.mrf.mxu0
        %v834 = vadd.f32 0.0, %v833
        %v835 = vpop.f32.mrf.mxu0
        %v836 = vadd.f32 0.0, %v835
        %837 = vmatmul.bf16.gmra.mxu0 %v547
        %v838 = vpop.f32.mrf.mxu0
        %v839 = vadd.f32 0.0, %v838
        %v840 = vpop.f32.mrf.mxu0
        %v841 = vadd.f32 0.0, %v840
        %842 = vmatmul.bf16.gmra.mxu0 %v794
        %v843 = vpop.f32.mrf.mxu0
        %v844 = vadd.f32 0.0, %v843
        %v845 = vpop.f32.mrf.mxu0
        %v846 = vadd.f32 0.0, %v845
        %847 = vdwg.mxu0
        %v848 = vadd.f32 %v770, %v809
        %v849 = vadd.f32 %v771, %v811
        %v850 = vadd.f32 %v772, %v814
        %v851 = vadd.f32 %v773, %v816
        %v852 = vadd.f32 %v774, %v819
        %v853 = vadd.f32 %v775, %v821
        %v854 = vadd.f32 %v776, %v824
        %v855 = vadd.f32 %v777, %v826
        %v856 = vadd.f32 %v778, %v829
        %v857 = vadd.f32 %v779, %v831
        %v858 = vadd.f32 %v780, %v834
        %v859 = vadd.f32 %v781, %v836
        %v860 = vadd.f32 %v782, %v839
        %v861 = vadd.f32 %v783, %v841
        %v862 = vadd.f32 %v784, %v844
        %v863 = vadd.f32 %v785, %v846
        %v865 = vshrl.u32 %v179, 16
        %v867 = vrot.slane %v865, 4
        %v868 = vshll.u32 %v179, 16
        %v870 = vrot.slane %v868, 5
        %v871 = vor.u32 %v867, %v870
        %v872 = vrot.slane %v871, 4
        %v874 = vshll.u32 %v180, 16
        %v876 = vrot.slane %v874, 5
        %v877 = vsel %vm188, %v872, %v876
        %v878 = vshrl.u32 %v180, 16
        %v880 = vrot.slane %v878, 4
        %v881 = vor.u32 %v880, %v876
        %v882 = vrot.slane %v881, 4
        %v884 = vshll.u32 %v181, 16
        %v886 = vrot.slane %v884, 5
        %v887 = vsel %vm188, %v882, %v886
        %s888 = scalar_lea.vmem %s1, 16
        %v889 = vld [vmem:[%s888] sm:$0xf]
        %v890 = vunpack.c.l.b16 %v877
        %v891 = vunpack.c.l.b16 %v887
        %v892 = vpack.c.b16 %v891, %v890
        %v894 = vsel %vm407, %v892, 0
        %v897 = vsel %vm432, %v889, 0
        %899 = vmatpush.bf16.msra.mxu0 0
        %900 = vmatpush.bf16.msra.mxu0 0
        %901 = vmatpush.bf16.msra.mxu0 0
        %902 = vmatpush.bf16.msra.mxu0 0
        %903 = vmatpush.bf16.msra.mxu0 0
        %904 = vmatpush.bf16.msra.mxu0 0
        %905 = vmatpush.bf16.msra.mxu0 0
        %906 = vmatpush.bf16.msra.mxu0 %v897
        %907 = vmatmul.bf16.gmra.mxu0 %v412
        %v908 = vpop.f32.mrf.mxu0
        %v909 = vadd.f32 0.0, %v908
        %v910 = vpop.f32.mrf.mxu0
        %v911 = vadd.f32 0.0, %v910
        %912 = vmatmul.bf16.gmra.mxu0 %v415
        %v913 = vpop.f32.mrf.mxu0
        %v914 = vadd.f32 0.0, %v913
        %v915 = vpop.f32.mrf.mxu0
        %v916 = vadd.f32 0.0, %v915
        %917 = vmatmul.bf16.gmra.mxu0 %v418
        %v918 = vpop.f32.mrf.mxu0
        %v919 = vadd.f32 0.0, %v918
        %v920 = vpop.f32.mrf.mxu0
        %v921 = vadd.f32 0.0, %v920
        %922 = vmatmul.bf16.gmra.mxu0 %v421
        %v923 = vpop.f32.mrf.mxu0
        %v924 = vadd.f32 0.0, %v923
        %v925 = vpop.f32.mrf.mxu0
        %v926 = vadd.f32 0.0, %v925
        %927 = vmatmul.bf16.gmra.mxu0 %v424
        %v928 = vpop.f32.mrf.mxu0
        %v929 = vadd.f32 0.0, %v928
        %v930 = vpop.f32.mrf.mxu0
        %v931 = vadd.f32 0.0, %v930
        %932 = vmatmul.bf16.gmra.mxu0 %v427
        %v933 = vpop.f32.mrf.mxu0
        %v934 = vadd.f32 0.0, %v933
        %v935 = vpop.f32.mrf.mxu0
        %v936 = vadd.f32 0.0, %v935
        %937 = vmatmul.bf16.gmra.mxu0 %v430
        %v938 = vpop.f32.mrf.mxu0
        %v939 = vadd.f32 0.0, %v938
        %v940 = vpop.f32.mrf.mxu0
        %v941 = vadd.f32 0.0, %v940
        %942 = vmatmul.bf16.gmra.mxu0 %v894
        %v943 = vpop.f32.mrf.mxu0
        %v944 = vadd.f32 0.0, %v943
        %v945 = vpop.f32.mrf.mxu0
        %v946 = vadd.f32 0.0, %v945
        %947 = vdwg.mxu0
        %v948 = vadd.f32 %v848, %v909
        %v949 = vadd.f32 %v849, %v911
        %v950 = vadd.f32 %v850, %v914
        %v951 = vadd.f32 %v851, %v916
        %v952 = vadd.f32 %v852, %v919
        %v953 = vadd.f32 %v853, %v921
        %v954 = vadd.f32 %v854, %v924
        %v955 = vadd.f32 %v855, %v926
        %v956 = vadd.f32 %v856, %v929
        %v957 = vadd.f32 %v857, %v931
        %v958 = vadd.f32 %v858, %v934
        %v959 = vadd.f32 %v859, %v936
        %v960 = vadd.f32 %v860, %v939
        %v961 = vadd.f32 %v861, %v941
        %v962 = vadd.f32 %v862, %v944
        %v963 = vadd.f32 %v863, %v946
        %v965 = vrot.slane %v179, 5
        %v966 = vrot.slane %v965, 4
        %v967 = vrot.slane %v180, 5
        %v968 = vsel %vm611, %v966, %v967
        %v969 = vrot.slane %v967, 4
        %v970 = vrot.slane %v181, 5
        %v971 = vsel %vm611, %v969, %v970
        %s972 = scalar_lea.vmem %s1, 20
        %v973 = vld [vmem:[%s972] sm:$0xf]
        %v974 = vunpack.c.l.b16 %v968
        %v975 = vunpack.c.l.b16 %v971
        %v976 = vpack.c.b16 %v975, %v974
        %v978 = vsel %vm407, %v976, 0
        %v981 = vsel %vm432, %v973, 0
        %983 = vmatpush.bf16.msra.mxu0 0
        %984 = vmatpush.bf16.msra.mxu0 0
        %985 = vmatpush.bf16.msra.mxu0 0
        %986 = vmatpush.bf16.msra.mxu0 0
        %987 = vmatpush.bf16.msra.mxu0 0
        %988 = vmatpush.bf16.msra.mxu0 0
        %989 = vmatpush.bf16.msra.mxu0 0
        %990 = vmatpush.bf16.msra.mxu0 %v981
        %991 = vmatmul.bf16.gmra.mxu0 %v698
        %v992 = vpop.f32.mrf.mxu0
        %v993 = vadd.f32 0.0, %v992
        %v994 = vpop.f32.mrf.mxu0
        %v995 = vadd.f32 0.0, %v994
        %996 = vmatmul.bf16.gmra.mxu0 %v701
        %v997 = vpop.f32.mrf.mxu0
        %v998 = vadd.f32 0.0, %v997
        %v999 = vpop.f32.mrf.mxu0
        %v1000 = vadd.f32 0.0, %v999
        %1001 = vmatmul.bf16.gmra.mxu0 %v704
        %v1002 = vpop.f32.mrf.mxu0
        %v1003 = vadd.f32 0.0, %v1002
        %v1004 = vpop.f32.mrf.mxu0
        %v1005 = vadd.f32 0.0, %v1004
        %1006 = vmatmul.bf16.gmra.mxu0 %v707
        %v1007 = vpop.f32.mrf.mxu0
        %v1008 = vadd.f32 0.0, %v1007
        %v1009 = vpop.f32.mrf.mxu0
        %v1010 = vadd.f32 0.0, %v1009
        %1011 = vmatmul.bf16.gmra.mxu0 %v710
        %v1012 = vpop.f32.mrf.mxu0
        %v1013 = vadd.f32 0.0, %v1012
        %v1014 = vpop.f32.mrf.mxu0
        %v1015 = vadd.f32 0.0, %v1014
        %1016 = vmatmul.bf16.gmra.mxu0 %v713
        %v1017 = vpop.f32.mrf.mxu0
        %v1018 = vadd.f32 0.0, %v1017
        %v1019 = vpop.f32.mrf.mxu0
        %v1020 = vadd.f32 0.0, %v1019
        %1021 = vmatmul.bf16.gmra.mxu0 %v716
        %v1022 = vpop.f32.mrf.mxu0
        %v1023 = vadd.f32 0.0, %v1022
        %v1024 = vpop.f32.mrf.mxu0
        %v1025 = vadd.f32 0.0, %v1024
        %1026 = vmatmul.bf16.gmra.mxu0 %v978
        %v1027 = vpop.f32.mrf.mxu0
        %v1028 = vadd.f32 0.0, %v1027
        %v1029 = vpop.f32.mrf.mxu0
        %v1030 = vadd.f32 0.0, %v1029
        %1031 = vdwg.mxu0
        %v1032 = vadd.f32 %v948, %v993
        %v1033 = vadd.f32 %v949, %v995
        %v1034 = vadd.f32 %v950, %v998
        %v1035 = vadd.f32 %v951, %v1000
        %v1036 = vadd.f32 %v952, %v1003
        %v1037 = vadd.f32 %v953, %v1005
        %v1038 = vadd.f32 %v954, %v1008
        %v1039 = vadd.f32 %v955, %v1010
        %v1040 = vadd.f32 %v956, %v1013
        %v1041 = vadd.f32 %v957, %v1015
        %v1042 = vadd.f32 %v958, %v1018
        %v1043 = vadd.f32 %v959, %v1020
        %v1044 = vadd.f32 %v960, %v1023
        %v1045 = vadd.f32 %v961, %v1025
        %v1046 = vadd.f32 %v962, %v1028
        %v1047 = vadd.f32 %v963, %v1030
        %s1048 = scalar_lea.vmem %s1, 24
        %v1049 = vld [vmem:[%s1048] sm:$0xf]
        %v1052 = vunpack.c.l.b16 %v182
        %v1053 = vunpack.c.l.b16 %v183
        %v1054 = vpack.c.b16 %v1053, %v1052
        %v1056 = vsel %vm407, %v1054, 0
        %v1059 = vsel %vm432, %v1049, 0
        %1061 = vmatpush.bf16.msra.mxu0 0
        %1062 = vmatpush.bf16.msra.mxu0 0
        %1063 = vmatpush.bf16.msra.mxu0 0
        %1064 = vmatpush.bf16.msra.mxu0 0
        %1065 = vmatpush.bf16.msra.mxu0 0
        %1066 = vmatpush.bf16.msra.mxu0 0
        %1067 = vmatpush.bf16.msra.mxu0 0
        %1068 = vmatpush.bf16.msra.mxu0 %v1059
        %1069 = vmatmul.bf16.gmra.mxu0 %v532
        %v1070 = vpop.f32.mrf.mxu0
        %v1071 = vadd.f32 0.0, %v1070
        %v1072 = vpop.f32.mrf.mxu0
        %v1073 = vadd.f32 0.0, %v1072
        %1074 = vmatmul.bf16.gmra.mxu0 %v535
        %v1075 = vpop.f32.mrf.mxu0
        %v1076 = vadd.f32 0.0, %v1075
        %v1077 = vpop.f32.mrf.mxu0
        %v1078 = vadd.f32 0.0, %v1077
        %1079 = vmatmul.bf16.gmra.mxu0 %v538
        %v1080 = vpop.f32.mrf.mxu0
        %v1081 = vadd.f32 0.0, %v1080
        %v1082 = vpop.f32.mrf.mxu0
        %v1083 = vadd.f32 0.0, %v1082
        %1084 = vmatmul.bf16.gmra.mxu0 %v541
        %v1085 = vpop.f32.mrf.mxu0
        %v1086 = vadd.f32 0.0, %v1085
        %v1087 = vpop.f32.mrf.mxu0
        %v1088 = vadd.f32 0.0, %v1087
        %1089 = vmatmul.bf16.gmra.mxu0 %v544
        %v1090 = vpop.f32.mrf.mxu0
        %v1091 = vadd.f32 0.0, %v1090
        %v1092 = vpop.f32.mrf.mxu0
        %v1093 = vadd.f32 0.0, %v1092
        %1094 = vmatmul.bf16.gmra.mxu0 %v547
        %v1095 = vpop.f32.mrf.mxu0
        %v1096 = vadd.f32 0.0, %v1095
        %v1097 = vpop.f32.mrf.mxu0
        %v1098 = vadd.f32 0.0, %v1097
        %1099 = vmatmul.bf16.gmra.mxu0 %v794
        %v1100 = vpop.f32.mrf.mxu0
        %v1101 = vadd.f32 0.0, %v1100
        %v1102 = vpop.f32.mrf.mxu0
        %v1103 = vadd.f32 0.0, %v1102
        %1104 = vmatmul.bf16.gmra.mxu0 %v1056
        %v1105 = vpop.f32.mrf.mxu0
        %v1106 = vadd.f32 0.0, %v1105
        %v1107 = vpop.f32.mrf.mxu0
        %v1108 = vadd.f32 0.0, %v1107
        %1109 = vdwg.mxu0
        %v1110 = vadd.f32 %v1032, %v1071
        %v1111 = vadd.f32 %v1033, %v1073
        %v1112 = vadd.f32 %v1034, %v1076
        %v1113 = vadd.f32 %v1035, %v1078
        %v1114 = vadd.f32 %v1036, %v1081
        %v1115 = vadd.f32 %v1037, %v1083
        %v1116 = vadd.f32 %v1038, %v1086
        %v1117 = vadd.f32 %v1039, %v1088
        %v1118 = vadd.f32 %v1040, %v1091
        %v1119 = vadd.f32 %v1041, %v1093
        %v1120 = vadd.f32 %v1042, %v1096
        %v1121 = vadd.f32 %v1043, %v1098
        %v1122 = vadd.f32 %v1044, %v1101
        %v1123 = vadd.f32 %v1045, %v1103
        %v1124 = vadd.f32 %v1046, %v1106
        %v1125 = vadd.f32 %v1047, %v1108
        %v1127 = vshrl.u32 %v182, 16
        %v1129 = vrot.slane %v1127, 4
        %v1130 = vshll.u32 %v182, 16
        %v1132 = vrot.slane %v1130, 5
        %v1133 = vor.u32 %v1129, %v1132
        %v1134 = vrot.slane %v1133, 4
        %v1136 = vshll.u32 %v183, 16
        %v1138 = vrot.slane %v1136, 5
        %v1139 = vsel %vm188, %v1134, %v1138
        %v1140 = vshrl.u32 %v183, 16
        %v1142 = vrot.slane %v1140, 4
        %v1143 = vor.u32 %v1142, %v1138
        %v1144 = vrot.slane %v1143, 4
        %v1146 = vshll.u32 %v184, 16
        %v1148 = vrot.slane %v1146, 5
        %v1149 = vsel %vm188, %v1144, %v1148
        %s1150 = scalar_lea.vmem %s1, 28
        %v1151 = vld [vmem:[%s1150] sm:$0xf]
        %v1152 = vunpack.c.l.b16 %v1139
        %v1153 = vunpack.c.l.b16 %v1149
        %v1154 = vpack.c.b16 %v1153, %v1152
        %v1156 = vsel %vm407, %v1154, 0
        %v1159 = vsel %vm432, %v1151, 0
        %1161 = vmatpush.bf16.msra.mxu0 0
        %1162 = vmatpush.bf16.msra.mxu0 0
        %1163 = vmatpush.bf16.msra.mxu0 0
        %1164 = vmatpush.bf16.msra.mxu0 0
        %1165 = vmatpush.bf16.msra.mxu0 0
        %1166 = vmatpush.bf16.msra.mxu0 0
        %1167 = vmatpush.bf16.msra.mxu0 0
        %1168 = vmatpush.bf16.msra.mxu0 %v1159
        %1169 = vmatmul.bf16.gmra.mxu0 %v415
        %v1170 = vpop.f32.mrf.mxu0
        %v1171 = vadd.f32 0.0, %v1170
        %v1172 = vpop.f32.mrf.mxu0
        %v1173 = vadd.f32 0.0, %v1172
        %1174 = vmatmul.bf16.gmra.mxu0 %v418
        %v1175 = vpop.f32.mrf.mxu0
        %v1176 = vadd.f32 0.0, %v1175
        %v1177 = vpop.f32.mrf.mxu0
        %v1178 = vadd.f32 0.0, %v1177
        %1179 = vmatmul.bf16.gmra.mxu0 %v421
        %v1180 = vpop.f32.mrf.mxu0
        %v1181 = vadd.f32 0.0, %v1180
        %v1182 = vpop.f32.mrf.mxu0
        %v1183 = vadd.f32 0.0, %v1182
        %1184 = vmatmul.bf16.gmra.mxu0 %v424
        %v1185 = vpop.f32.mrf.mxu0
        %v1186 = vadd.f32 0.0, %v1185
        %v1187 = vpop.f32.mrf.mxu0
        %v1188 = vadd.f32 0.0, %v1187
        %1189 = vmatmul.bf16.gmra.mxu0 %v427
        %v1190 = vpop.f32.mrf.mxu0
        %v1191 = vadd.f32 0.0, %v1190
        %v1192 = vpop.f32.mrf.mxu0
        %v1193 = vadd.f32 0.0, %v1192
        %1194 = vmatmul.bf16.gmra.mxu0 %v430
        %v1195 = vpop.f32.mrf.mxu0
        %v1196 = vadd.f32 0.0, %v1195
        %v1197 = vpop.f32.mrf.mxu0
        %v1198 = vadd.f32 0.0, %v1197
        %1199 = vmatmul.bf16.gmra.mxu0 %v894
        %v1200 = vpop.f32.mrf.mxu0
        %v1201 = vadd.f32 0.0, %v1200
        %v1202 = vpop.f32.mrf.mxu0
        %v1203 = vadd.f32 0.0, %v1202
        %1204 = vmatmul.bf16.gmra.mxu0 %v1156
        %v1205 = vpop.f32.mrf.mxu0
        %v1206 = vadd.f32 0.0, %v1205
        %v1207 = vpop.f32.mrf.mxu0
        %v1208 = vadd.f32 0.0, %v1207
        %1209 = vdwg.mxu0
        %v1210 = vadd.f32 %v1110, %v1171
        %v1211 = vadd.f32 %v1111, %v1173
        %v1212 = vadd.f32 %v1112, %v1176
        %v1213 = vadd.f32 %v1113, %v1178
        %v1214 = vadd.f32 %v1114, %v1181
        %v1215 = vadd.f32 %v1115, %v1183
        %v1216 = vadd.f32 %v1116, %v1186
        %v1217 = vadd.f32 %v1117, %v1188
        %v1218 = vadd.f32 %v1118, %v1191
        %v1219 = vadd.f32 %v1119, %v1193
        %v1220 = vadd.f32 %v1120, %v1196
        %v1221 = vadd.f32 %v1121, %v1198
        %v1222 = vadd.f32 %v1122, %v1201
        %v1223 = vadd.f32 %v1123, %v1203
        %v1224 = vadd.f32 %v1124, %v1206
        %v1225 = vadd.f32 %v1125, %v1208
        %v1227 = vrot.slane %v182, 5
        %v1228 = vrot.slane %v1227, 4
        %v1229 = vrot.slane %v183, 5
        %v1230 = vsel %vm611, %v1228, %v1229
        %v1231 = vrot.slane %v1229, 4
        %v1232 = vrot.slane %v184, 5
        %v1233 = vsel %vm611, %v1231, %v1232
        %s1234 = scalar_lea.vmem %s1, 32
        %v1235 = vld [vmem:[%s1234] sm:$0xf]
        %v1236 = vunpack.c.l.b16 %v1230
        %v1237 = vunpack.c.l.b16 %v1233
        %v1238 = vpack.c.b16 %v1237, %v1236
        %v1240 = vsel %vm407, %v1238, 0
        %v1243 = vsel %vm432, %v1235, 0
        %1245 = vmatpush.bf16.msra.mxu0 0
        %1246 = vmatpush.bf16.msra.mxu0 0
        %1247 = vmatpush.bf16.msra.mxu0 0
        %1248 = vmatpush.bf16.msra.mxu0 0
        %1249 = vmatpush.bf16.msra.mxu0 0
        %1250 = vmatpush.bf16.msra.mxu0 0
        %1251 = vmatpush.bf16.msra.mxu0 0
        %1252 = vmatpush.bf16.msra.mxu0 %v1243
        %1253 = vmatmul.bf16.gmra.mxu0 %v701
        %v1254 = vpop.f32.mrf.mxu0
        %v1255 = vadd.f32 0.0, %v1254
        %v1256 = vpop.f32.mrf.mxu0
        %v1257 = vadd.f32 0.0, %v1256
        %1258 = vmatmul.bf16.gmra.mxu0 %v704
        %v1259 = vpop.f32.mrf.mxu0
        %v1260 = vadd.f32 0.0, %v1259
        %v1261 = vpop.f32.mrf.mxu0
        %v1262 = vadd.f32 0.0, %v1261
        %1263 = vmatmul.bf16.gmra.mxu0 %v707
        %v1264 = vpop.f32.mrf.mxu0
        %v1265 = vadd.f32 0.0, %v1264
        %v1266 = vpop.f32.mrf.mxu0
        %v1267 = vadd.f32 0.0, %v1266
        %1268 = vmatmul.bf16.gmra.mxu0 %v710
        %v1269 = vpop.f32.mrf.mxu0
        %v1270 = vadd.f32 0.0, %v1269
        %v1271 = vpop.f32.mrf.mxu0
        %v1272 = vadd.f32 0.0, %v1271
        %1273 = vmatmul.bf16.gmra.mxu0 %v713
        %v1274 = vpop.f32.mrf.mxu0
        %v1275 = vadd.f32 0.0, %v1274
        %v1276 = vpop.f32.mrf.mxu0
        %v1277 = vadd.f32 0.0, %v1276
        %1278 = vmatmul.bf16.gmra.mxu0 %v716
        %v1279 = vpop.f32.mrf.mxu0
        %v1280 = vadd.f32 0.0, %v1279
        %v1281 = vpop.f32.mrf.mxu0
        %v1282 = vadd.f32 0.0, %v1281
        %1283 = vmatmul.bf16.gmra.mxu0 %v978
        %v1284 = vpop.f32.mrf.mxu0
        %v1285 = vadd.f32 0.0, %v1284
        %v1286 = vpop.f32.mrf.mxu0
        %v1287 = vadd.f32 0.0, %v1286
        %1288 = vmatmul.bf16.gmra.mxu0 %v1240
        %v1289 = vpop.f32.mrf.mxu0
        %v1290 = vadd.f32 0.0, %v1289
        %v1291 = vpop.f32.mrf.mxu0
        %v1292 = vadd.f32 0.0, %v1291
        %1293 = vdwg.mxu0
        %v1294 = vadd.f32 %v1210, %v1255
        %v1295 = vadd.f32 %v1211, %v1257
        %v1296 = vadd.f32 %v1212, %v1260
        %v1297 = vadd.f32 %v1213, %v1262
        %v1298 = vadd.f32 %v1214, %v1265
        %v1299 = vadd.f32 %v1215, %v1267
        %v1300 = vadd.f32 %v1216, %v1270
        %v1301 = vadd.f32 %v1217, %v1272
        %v1302 = vadd.f32 %v1218, %v1275
        %v1303 = vadd.f32 %v1219, %v1277
        %v1304 = vadd.f32 %v1220, %v1280
        %v1305 = vadd.f32 %v1221, %v1282
        %v1306 = vadd.f32 %v1222, %v1285
        %v1307 = vadd.f32 %v1223, %v1287
        %v1308 = vadd.f32 %v1224, %v1290
        %v1309 = vadd.f32 %v1225, %v1292
        %v1310 = vld [vmem:[%s2] sm:$0x1]
        %v1312 = vperm.slane %v1310, 0
        %v1314 = vadd.f32 %v1294, %v1312
        %v1315 = vadd.f32 %v1295, %v1312
        %v1316 = vadd.f32 %v1296, %v1312
        %v1317 = vadd.f32 %v1297, %v1312
        %v1318 = vadd.f32 %v1298, %v1312
        %v1319 = vadd.f32 %v1299, %v1312
        %v1320 = vadd.f32 %v1300, %v1312
        %v1321 = vadd.f32 %v1301, %v1312
        %v1322 = vadd.f32 %v1302, %v1312
        %v1323 = vadd.f32 %v1303, %v1312
        %v1324 = vadd.f32 %v1304, %v1312
        %v1325 = vadd.f32 %v1305, %v1312
        %v1326 = vadd.f32 %v1306, %v1312
        %v1327 = vadd.f32 %v1307, %v1312
        %v1328 = vadd.f32 %v1308, %v1312
        %v1329 = vadd.f32 %v1309, %v1312
        %v1330 = vmax.f32 %v1314, 0.0
        %v1331 = vmax.f32 %v1315, 0.0
        %v1332 = vmax.f32 %v1316, 0.0
        %v1333 = vmax.f32 %v1317, 0.0
        %v1334 = vmax.f32 %v1318, 0.0
        %v1335 = vmax.f32 %v1319, 0.0
        %v1336 = vmax.f32 %v1320, 0.0
        %v1337 = vmax.f32 %v1321, 0.0
        %v1338 = vmax.f32 %v1322, 0.0
        %v1339 = vmax.f32 %v1323, 0.0
        %v1340 = vmax.f32 %v1324, 0.0
        %v1341 = vmax.f32 %v1325, 0.0
        %v1342 = vmax.f32 %v1326, 0.0
        %v1343 = vmax.f32 %v1327, 0.0
        %v1344 = vmax.f32 %v1328, 0.0
        %v1345 = vmax.f32 %v1329, 0.0
        %v1346 = vpack.c.bf16 %v1330, %v1330
        %v1347 = vpack.c.bf16 %v1331, %v1331
        %v1348 = vpack.c.bf16 %v1332, %v1332
        %v1349 = vpack.c.bf16 %v1333, %v1333
        %v1350 = vpack.c.bf16 %v1334, %v1334
        %v1351 = vpack.c.bf16 %v1335, %v1335
        %v1352 = vpack.c.bf16 %v1336, %v1336
        %v1353 = vpack.c.bf16 %v1337, %v1337
        %v1354 = vpack.c.bf16 %v1338, %v1338
        %v1355 = vpack.c.bf16 %v1339, %v1339
        %v1356 = vpack.c.bf16 %v1340, %v1340
        %v1357 = vpack.c.bf16 %v1341, %v1341
        %v1358 = vpack.c.bf16 %v1342, %v1342
        %v1359 = vpack.c.bf16 %v1343, %v1343
        %v1360 = vpack.c.bf16 %v1344, %v1344
        %v1361 = vpack.c.bf16 %v1345, %v1345
        %vm1362 = vcmask 191488
        %1363 = vst.msk [vmem:[%s148] sm:$0xf] %vm1362, %v1346
        %1364 = vst.msk [vmem:[%s148 + $0x4] sm:$0xf] %vm1362, %v1347
        %1365 = vst.msk [vmem:[%s148 + $0x8] sm:$0xf] %vm1362, %v1348
        %1366 = vst.msk [vmem:[%s148 + $0xc] sm:$0xf] %vm1362, %v1349
        %1367 = vst.msk [vmem:[%s148 + $0x10] sm:$0xf] %vm1362, %v1350
        %1368 = vst.msk [vmem:[%s148 + $0x14] sm:$0xf] %vm1362, %v1351
        %1369 = vst.msk [vmem:[%s148 + $0x18] sm:$0xf] %vm1362, %v1352
        %1370 = vst.msk [vmem:[%s148 + $0x1c] sm:$0xf] %vm1362, %v1353
        %1371 = vst.msk [vmem:[%s148 + $0x20] sm:$0xf] %vm1362, %v1354
        %1372 = vst.msk [vmem:[%s148 + $0x24] sm:$0xf] %vm1362, %v1355
        %1373 = vst.msk [vmem:[%s148 + $0x28] sm:$0xf] %vm1362, %v1356
        %1374 = vst.msk [vmem:[%s148 + $0x2c] sm:$0xf] %vm1362, %v1357
        %1375 = vst.msk [vmem:[%s148 + $0x30] sm:$0xf] %vm1362, %v1358
        %1376 = vst.msk [vmem:[%s148 + $0x34] sm:$0xf] %vm1362, %v1359
        %1377 = vst.msk [vmem:[%s148 + $0x38] sm:$0xf] %vm1362, %v1360
        %1378 = vst.msk [vmem:[%s148 + $0x3c] sm:$0xf] %vm1362, %v1361
        %s1379 = sand.u32 %s88, 1
        %s1380 = scalar_lea.sflag [#allocation3], %s1379
        %s1381 = sand.u32 %s88, 1
        %s1382 = smul.addr %s1381, 64
        %s1383 = scalar_lea.vmem [#allocation2], %s1382
        // Predicated region
        $region33: #{tpu_custom_call.1} parent=31 // pred_check
          %p1384 = pneg %p98
        $region34: #{tpu_custom_call.1} parent=31 // pred_check_branch
          %1386 = sbr.rel (%p1384) target = $region36
        $region35: #{tpu_custom_call.1} parent=31 // pred_region
          %s1387 = smul.u32 8, %s17
          %1389 = vsyncadd %s1380, 0
          %s1390 = smul.addr %s1387, 2
          %s1391 = smul.addr %s1390, 4
          %s1392 = scalar_lea.hbm %s3, %s1391
          %s1393 = sshll.u32 %s1383, 4
          %s1394 = int_to_ptr.vmem [resolvable:$true] %s1393
          %s1395 = sshll.u32 %s1392, 4
          %s1396 = int_to_ptr.hbm [resolvable:$true] %s1395
          %1401 = dma.vmem_to_hbm [thread:$0]  %s1394, 1024, %s1396, %s1380, 64, 64, 4
        $region36: #{tpu_custom_call.1} parent=31 // pred_fallthru
          _
      $region32: #{tpu_custom_call.1} parent=5 // pred_fallthru
        _
      %p1402 = scmp.le.s32.totalorder 2, %s12
      // Predicated region
      $region37: #{tpu_custom_call.1} parent=5 // pred_check
        %p1403 = pneg %p1402
      $region38: #{tpu_custom_call.1} parent=5 // pred_check_branch
        %1405 = sbr.rel (%p1403) target = $region40
      $region39: #{tpu_custom_call.1} parent=5 // pred_region
        %s1406 = ssub.s32 %s12, 2
        // Predicated region
        $region41: #{tpu_custom_call.1} parent=39 // pred_check
          %p1407 = pneg %p104
        $region42: #{tpu_custom_call.1} parent=39 // pred_check_branch
          %1409 = sbr.rel (%p1407) target = $region44
        $region43: #{tpu_custom_call.1} parent=39 // pred_region
          %s1410 = sand.u32 %s89, 1
          %s1411 = scalar_lea.sflag [#allocation3], %s1410
          %s1412 = sand.u32 %s89, 1
          %s1413 = smul.addr %s1412, 64
          %s1414 = scalar_lea.vmem [#allocation2], %s1413
          %1416 = dma.done %s1411, 1024
        $region44: #{tpu_custom_call.1} parent=39 // pred_fallthru
          _
      $region40: #{tpu_custom_call.1} parent=5 // pred_fallthru
        _
    $region6: #{tpu_custom_call.1} parent=1 // loop_footer
      %s16 = sadd.s32 1, %s12
    $region7: #{tpu_custom_call.1} parent=1 // loop_footer_branch
      %11 = sbr.rel target = $region3
    $region8: #{tpu_custom_call.1} parent=1 // loop_exit
      _
    %1417 = vsyncpa [#allocation3], 1
    %s1418 = scalar_lea.sflag [#allocation3], 1
    %1419 = vsyncpa %s1418, 1

</llo_original>
